<compile_context>
chip_gen: v7x
topology: tpu7x:2x2x1
jax: 0.10.0
libtpu: 0.0.40
codegen_flags: <defaults>
</compile_context>

<pallas_src>
import math

import jax
import jax.numpy as jnp
from jax.experimental import pallas as pl
from jax.experimental.pallas import tpu as pltpu

# ----------------------------- model hyper-params (small) -----------------------------
B, S = 2, 8
STATE_DIM = 16
D_MODEL = 32
NUM_HEADS = 4
D_K = D_MODEL // NUM_HEADS
NUM_LAYERS = 2
D_FF = 64
ACTION_DIM = 8
MAX_LEN = 64          # positional-encoding table length
LN_EPS = 1e-5
LANE = 128            # slab lane padding

VMEM_SPEC = pl.BlockSpec(memory_space=pltpu.MemorySpace.VMEM)


# ----------------------------------- fused kernel -----------------------------------
def make_kernel(wlayout, flayout):
    """Build the fused kernel; slab layouts (name -> (row, nrows, ncols)) are static."""

    def kernel(x_ref, w_ref, f_ref, out_ref):
        def W(name):                      # bf16 matmul-weight slab view (static slice)
            r, nr, nc = wlayout[name]
            return w_ref[r:r + nr, 0:nc]

        def Fp(name):                     # f32 additive-constant slab view
            r, nr, nc = flayout[name]
            return f_ref[r:r + nr, 0:nc]

        def mm(a, w_bf16):                # activation(f32) @ weight(bf16) on the MXU
            return jnp.dot(a.astype(jnp.bfloat16), w_bf16,
                           preferred_element_type=jnp.float32)

        def ln(z, g, b):                  # LayerNorm, f32 VPU/EUP math
            mu = jnp.mean(z, axis=-1, keepdims=True)
            var = jnp.mean(jnp.square(z - mu), axis=-1, keepdims=True)
            return (z - mu) * jax.lax.rsqrt(var + LN_EPS) * g + b

        # ---- state embedding + positional encoding (emb bias folded into PE table)
        x = mm(x_ref[...], W("emb_w")) + Fp("pe_bias")            # (B*S, D) f32

        # Block-diagonal batch mask: 0 within a batch, -1e9 across batches.
        mask = Fp("attn_mask")                                     # (B*S, B*S) f32

        # ---- transformer layers (statically unrolled)
        for li in range(NUM_LAYERS):
            # Fused QKV projection; 1/sqrt(d_k) pre-folded into the Q columns.
            qkv = mm(x, W(f"wqkv{li}")) + Fp(f"bqkv{li}")          # (B*S, 3D)

            ctx_tiles = []
            for h in range(NUM_HEADS):
                c0 = h * D_K
                q = qkv[:, c0:c0 + D_K].astype(jnp.bfloat16)
                k = qkv[:, D_MODEL + c0:D_MODEL + c0 + D_K].astype(jnp.bfloat16)
                v = qkv[:, 2 * D_MODEL + c0:2 * D_MODEL + c0 + D_K].astype(jnp.bfloat16)
                # q @ k^T over all B*S rows at once; cross-batch pairs masked out.
                s = jax.lax.dot_general(q, k, (((1,), (1,)), ((), ())),
                                        preferred_element_type=jnp.float32)
                s = s + mask
                m = jnp.max(s, axis=-1, keepdims=True)
                p = jnp.exp(s - m)
                p = p / jnp.sum(p, axis=-1, keepdims=True)         # exact softmax (f32)
                ctx_tiles.append(jnp.dot(p.astype(jnp.bfloat16), v,
                                         preferred_element_type=jnp.float32))
            ctx = jnp.concatenate(ctx_tiles, axis=-1)              # (B*S, D), no scratch

            attn_out = mm(ctx, W(f"wo{li}")) + Fp(f"bo{li}")
            x = ln(x + attn_out, Fp(f"ln1_g{li}"), Fp(f"ln1_b{li}"))

            ff = jnp.maximum(mm(x, W(f"w1{li}")) + Fp(f"b1{li}"), 0.0)
            ff = mm(ff, W(f"w2{li}")) + Fp(f"b2{li}")
            x = ln(x + ff, Fp(f"ln2_g{li}"), Fp(f"ln2_b{li}"))

        # ---- mean pool over sequence via pre-baked constant pooling matmul
        pooled = jnp.dot(W("pool"), x.astype(jnp.bfloat16),
                         preferred_element_type=jnp.float32)       # (B, D)

        # ---- fused output heads -> single [action_logits | value] store
        hh = jnp.maximum(mm(pooled, W("head_w1")) + Fp("head_b1"), 0.0)
        out_ref[...] = mm(hh, W("head_w2")) + Fp("head_b2")        # (B, A+1)

    return kernel


# ----------------------------------- wrapper -----------------------------------
def build_forward(wlayout, flayout):
    kernel = make_kernel(wlayout, flayout)

    @jax.jit
    def forward(state, wslab, fslab):
        b, s, _ = state.shape
        xf = state.reshape(b * s, STATE_DIM)      # metadata-only reshape outside the kernel
        out = pl.pallas_call(
            kernel,
            out_shape=jax.ShapeDtypeStruct((b, ACTION_DIM + 1), jnp.float32),
            in_specs=[VMEM_SPEC, VMEM_SPEC, VMEM_SPEC],
            out_specs=VMEM_SPEC,
        )(xf, wslab, fslab)
        return out[:, :ACTION_DIM], out[:, ACTION_DIM:ACTION_DIM + 1]

    return forward


# ------------------------------- parameter initialization -------------------------------
def init_linear(key, fan_in, fan_out):
    k1, k2 = jax.random.split(key)
    bound = 1.0 / math.sqrt(fan_in)
    w = jax.random.uniform(k1, (fan_in, fan_out), jnp.float32, -bound, bound)
    b = jax.random.uniform(k2, (1, fan_out), jnp.float32, -bound, bound)
    return w, b


def make_positional_encoding(max_len, d_model):
    position = jnp.arange(max_len, dtype=jnp.float32)[:, None]
    div_term = jnp.exp(
        jnp.arange(0, d_model, 2, dtype=jnp.float32) * (-math.log(10000.0) / d_model)
    )
    pe = jnp.zeros((max_len, d_model), jnp.float32)
    pe = pe.at[:, 0::2].set(jnp.sin(position * div_term))
    pe = pe.at[:, 1::2].set(jnp.cos(position * div_term))
    return pe


def init_params(key):
    keys = jax.random.split(key, 6 + NUM_LAYERS)
    params = {}
    params["emb_w"], params["emb_b"] = init_linear(keys[0], STATE_DIM, D_MODEL)
    params["pe"] = make_positional_encoding(MAX_LEN, D_MODEL)

    layers = []
    for li in range(NUM_LAYERS):
        lk = jax.random.split(keys[1 + li], 6)
        lp = {}
        lp["wq"], lp["bq"] = init_linear(lk[0], D_MODEL, D_MODEL)
        lp["wk"], lp["bk"] = init_linear(lk[1], D_MODEL, D_MODEL)
        lp["wv"], lp["bv"] = init_linear(lk[2], D_MODEL, D_MODEL)
        lp["wo"], lp["bo"] = init_linear(lk[3], D_MODEL, D_MODEL)
        lp["w1"], lp["b1"] = init_linear(lk[4], D_MODEL, D_FF)
        lp["w2"], lp["b2"] = init_linear(lk[5], D_FF, D_MODEL)
        lp["ln1_g"] = jnp.ones((1, D_MODEL), jnp.float32)
        lp["ln1_b"] = jnp.zeros((1, D_MODEL), jnp.float32)
        lp["ln2_g"] = jnp.ones((1, D_MODEL), jnp.float32)
        lp["ln2_b"] = jnp.zeros((1, D_MODEL), jnp.float32)
        layers.append(lp)
    params["layers"] = layers

    params["op_w1"], params["op_b1"] = init_linear(keys[1 + NUM_LAYERS], D_MODEL, D_MODEL // 2)
    params["op_w2"], params["op_b2"] = init_linear(keys[2 + NUM_LAYERS], D_MODEL // 2, ACTION_DIM)
    params["vh_w1"], params["vh_b1"] = init_linear(keys[3 + NUM_LAYERS], D_MODEL, D_MODEL // 2)
    params["vh_w2"], params["vh_b2"] = init_linear(keys[4 + NUM_LAYERS], D_MODEL // 2, 1)
    return params


# ------------------------------- slab packing (one-time) -------------------------------
def _pack(entries, dtype, row_align):
    """Pack named 2-D arrays into one (rows, 128) slab; returns (slab, layout)."""
    layout, blocks, row = {}, [], 0
    for name, arr in entries:
        arr = jnp.asarray(arr, jnp.float32)
        nr, nc = arr.shape
        pad_r = (-nr) % row_align
        block = jnp.zeros((nr + pad_r, LANE), jnp.float32).at[:nr, :nc].set(arr)
        blocks.append(block)
        layout[name] = (row, nr, nc)
        row += nr + pad_r
    return jnp.concatenate(blocks, axis=0).astype(dtype), layout


def prepare_packed_params(params, batch, seq):
    """Fuse QKV / heads, fold scale + emb bias + PE quirk, pre-bake mask & pooling,
    then pack everything into one bf16 matmul-weight slab and one f32 constant slab."""
    scale = math.sqrt(D_K)
    bs = batch * seq

    # PyTorch quirk: pe indexed by batch, broadcast over seq -> expand to (B*S, D);
    # fold the embedding bias in as well.
    pe_bias = jnp.repeat(params["pe"][:batch], seq, axis=0) + params["emb_b"]

    # Block-diagonal batch mask (0 within a batch's S keys, -1e9 across batches).
    ids = jnp.arange(bs) // seq
    attn_mask = jnp.where(ids[:, None] == ids[None, :], 0.0, -1e9).astype(jnp.float32)

    # Constant mean-pool matrix: (B, B*S) with 1/S inside each batch's row block.
    pool = jnp.where((jnp.arange(bs)[None, :] // seq) == jnp.arange(batch)[:, None],
                     1.0 / seq, 0.0).astype(jnp.float32)

    # Fused output heads: shared first layer [op_w1 | vh_w1], block-diagonal second layer.
    half = D_MODEL // 2
    head_w1 = jnp.concatenate([params["op_w1"], params["vh_w1"]], axis=1)   # (D, 2*half)
    head_b1 = jnp.concatenate([params["op_b1"], params["vh_b1"]], axis=1)   # (1, 2*half)
    head_w2 = jnp.zeros((2 * half, ACTION_DIM + 1), jnp.float32)
    head_w2 = head_w2.at[:half, :ACTION_DIM].set(params["op_w2"])
    head_w2 = head_w2.at[half:, ACTION_DIM:].set(params["vh_w2"])           # (2*half, A+1)
    head_b2 = jnp.concatenate([params["op_b2"], params["vh_b2"]], axis=1)   # (1, A+1)

    w_entries = [("emb_w", params["emb_w"])]
    f_entries = [("pe_bias", pe_bias), ("attn_mask", attn_mask)]
    for li, lp in enumerate(params["layers"]):
        # Fold 1/sqrt(d_k) into the Q projection so attention needs no in-kernel scale.
        wqkv = jnp.concatenate([lp["wq"] / scale, lp["wk"], lp["wv"]], axis=1)
        bqkv = jnp.concatenate([lp["bq"] / scale, lp["bk"], lp["bv"]], axis=1)
        w_entries += [(f"wqkv{li}", wqkv), (f"wo{li}", lp["wo"]),
                      (f"w1{li}", lp["w1"]), (f"w2{li}", lp["w2"])]
        f_entries += [(f"bqkv{li}", bqkv), (f"bo{li}", lp["bo"]),
                      (f"ln1_g{li}", lp["ln1_g"]), (f"ln1_b{li}", lp["ln1_b"]),
                      (f"b1{li}", lp["b1"]), (f"b2{li}", lp["b2"]),
                      (f"ln2_g{li}", lp["ln2_g"]), (f"ln2_b{li}", lp["ln2_b"])]
    w_entries += [("pool", pool), ("head_w1", head_w1), ("head_w2", head_w2)]
    f_entries += [("head_b1", head_b1), ("head_b2", head_b2)]

    # bf16 slab row-aligned to 16 (bf16 sublane packing), f32 slab to 8.
    wslab, wlayout = _pack(w_entries, jnp.bfloat16, row_align=16)
    fslab, flayout = _pack(f_entries, jnp.float32, row_align=8)
    return wslab, fslab, wlayout, flayout


# ------------------------------------------ main ------------------------------------------
if __name__ == "__main__":
    key = jax.random.PRNGKey(0)
    k_param, k_state = jax.random.split(key)

    params = init_params(k_param)
    wslab, fslab, wlayout, flayout = prepare_packed_params(params, B, S)
    forward = build_forward(wlayout, flayout)

    state = jax.random.normal(k_state, (B, S, STATE_DIM), jnp.float32)

    action_logits, value = forward(state, wslab, fslab)
    jax.block_until_ready((action_logits, value))

    assert action_logits.shape == (B, ACTION_DIM)
    assert value.shape == (B, 1)
    assert bool(jnp.all(jnp.isfinite(action_logits))) and bool(jnp.all(jnp.isfinite(value)))
    print("KERNEL_OK")
</pallas_src>

<mosaic_0001>
module attributes {stable_mosaic.version = 11 : i64} {
  func.func @kernel(%arg0: memref<16x16xf32, #tpu.memory_space<vmem>>, %arg1: memref<416x128xbf16, #tpu.memory_space<vmem>>, %arg2: memref<176x128xf32, #tpu.memory_space<vmem>>, %arg3: memref<2x9xf32, #tpu.memory_space<vmem>>) attributes {dimension_semantics = [], scalar_prefetch = 0 : i64, scratch_operands = 0 : i64, tpu.core_type = #tpu.core_type<tc>} {
    %c0 = arith.constant 0 : index
    %c0_0 = arith.constant 0 : index
    %0 = vector.load %arg0[%c0, %c0_0] : memref<16x16xf32, #tpu.memory_space<vmem>>, vector<16x16xf32>
    %c0_1 = arith.constant 0 : index
    %c0_2 = arith.constant 0 : index
    %1 = vector.load %arg1[%c0_1, %c0_2] : memref<416x128xbf16, #tpu.memory_space<vmem>>, vector<16x32xbf16>
    %2 = arith.truncf %0 : vector<16x16xf32> to vector<16x16xbf16>
    %cst = arith.constant dense<0.000000e+00> : vector<16x32xf32>
    %3 = tpu.matmul %2, %1, %cst {dimension_numbers = #tpu.dot_dimension_numbers<[1], [0], [0], [1], [0, 0, 1, 1], [], []>} : vector<16x16xbf16>, vector<16x32xbf16>, vector<16x32xf32> -> vector<16x32xf32>
    %c0_3 = arith.constant 0 : index
    %c0_4 = arith.constant 0 : index
    %4 = vector.load %arg2[%c0_3, %c0_4] : memref<176x128xf32, #tpu.memory_space<vmem>>, vector<16x32xf32>
    %5 = arith.addf %3, %4 : vector<16x32xf32>
    %c16 = arith.constant 16 : index
    %c0_5 = arith.constant 0 : index
    %6 = vector.load %arg2[%c16, %c0_5] : memref<176x128xf32, #tpu.memory_space<vmem>>, vector<16x16xf32>
    %c16_6 = arith.constant 16 : index
    %c0_7 = arith.constant 0 : index
    %7 = vector.load %arg1[%c16_6, %c0_7] : memref<416x128xbf16, #tpu.memory_space<vmem>>, vector<32x96xbf16>
    %8 = arith.truncf %5 : vector<16x32xf32> to vector<16x32xbf16>
    %cst_8 = arith.constant dense<0.000000e+00> : vector<16x96xf32>
    %9 = tpu.matmul %8, %7, %cst_8 {dimension_numbers = #tpu.dot_dimension_numbers<[1], [0], [0], [1], [0, 0, 1, 1], [], []>} : vector<16x32xbf16>, vector<32x96xbf16>, vector<16x96xf32> -> vector<16x96xf32>
    %c32 = arith.constant 32 : index
    %c0_9 = arith.constant 0 : index
    %10 = vector.load %arg2[%c32, %c0_9] : memref<176x128xf32, #tpu.memory_space<vmem>>, vector<1x96xf32>
    %11 = vector.broadcast %10 : vector<1x96xf32> to vector<16x96xf32>
    %12 = arith.addf %9, %11 : vector<16x96xf32>
    %13 = vector.extract_strided_slice %12 {offsets = [0, 0], sizes = [16, 8], strides = [1, 1]} : vector<16x96xf32> to vector<16x8xf32>
    %14 = arith.truncf %13 : vector<16x8xf32> to vector<16x8xbf16>
    %15 = vector.extract_strided_slice %12 {offsets = [0, 32], sizes = [16, 8], strides = [1, 1]} : vector<16x96xf32> to vector<16x8xf32>
    %16 = arith.truncf %15 : vector<16x8xf32> to vector<16x8xbf16>
    %17 = vector.extract_strided_slice %12 {offsets = [0, 64], sizes = [16, 8], strides = [1, 1]} : vector<16x96xf32> to vector<16x8xf32>
    %18 = arith.truncf %17 : vector<16x8xf32> to vector<16x8xbf16>
    %cst_10 = arith.constant dense<0.000000e+00> : vector<16x16xf32>
    %19 = tpu.matmul %14, %16, %cst_10 {dimension_numbers = #tpu.dot_dimension_numbers<[1], [1], [0], [0], [0, 0, 1, 0], [], []>} : vector<16x8xbf16>, vector<16x8xbf16>, vector<16x16xf32> -> vector<16x16xf32>
    %20 = arith.addf %19, %6 : vector<16x16xf32>
    %cst_11 = arith.constant dense<0xFF800000> : vector<16xf32>
    %21 = vector.multi_reduction <maximumf>, %20, %cst_11 [1] : vector<16x16xf32> to vector<16xf32>
    %22 = vector.shape_cast %21 : vector<16xf32> to vector<16x1xf32>
    %23 = vector.broadcast %22 : vector<16x1xf32> to vector<16x16xf32>
    %24 = arith.subf %20, %23 : vector<16x16xf32>
    %25 = math.exp %24 : vector<16x16xf32>
    %cst_12 = arith.constant dense<0.000000e+00> : vector<16xf32>
    %26 = vector.multi_reduction <add>, %25, %cst_12 [1] : vector<16x16xf32> to vector<16xf32>
    %27 = vector.shape_cast %26 : vector<16xf32> to vector<16x1xf32>
    %28 = vector.broadcast %27 : vector<16x1xf32> to vector<16x16xf32>
    %29 = arith.divf %25, %28 : vector<16x16xf32>
    %30 = arith.truncf %29 : vector<16x16xf32> to vector<16x16xbf16>
    %cst_13 = arith.constant dense<0.000000e+00> : vector<16x8xf32>
    %31 = tpu.matmul %30, %18, %cst_13 {dimension_numbers = #tpu.dot_dimension_numbers<[1], [0], [0], [1], [0, 0, 1, 1], [], []>} : vector<16x16xbf16>, vector<16x8xbf16>, vector<16x8xf32> -> vector<16x8xf32>
    %32 = vector.extract_strided_slice %12 {offsets = [0, 8], sizes = [16, 8], strides = [1, 1]} : vector<16x96xf32> to vector<16x8xf32>
    %33 = arith.truncf %32 : vector<16x8xf32> to vector<16x8xbf16>
    %34 = vector.extract_strided_slice %12 {offsets = [0, 40], sizes = [16, 8], strides = [1, 1]} : vector<16x96xf32> to vector<16x8xf32>
    %35 = arith.truncf %34 : vector<16x8xf32> to vector<16x8xbf16>
    %36 = vector.extract_strided_slice %12 {offsets = [0, 72], sizes = [16, 8], strides = [1, 1]} : vector<16x96xf32> to vector<16x8xf32>
    %37 = arith.truncf %36 : vector<16x8xf32> to vector<16x8xbf16>
    %cst_14 = arith.constant dense<0.000000e+00> : vector<16x16xf32>
    %38 = tpu.matmul %33, %35, %cst_14 {dimension_numbers = #tpu.dot_dimension_numbers<[1], [1], [0], [0], [0, 0, 1, 0], [], []>} : vector<16x8xbf16>, vector<16x8xbf16>, vector<16x16xf32> -> vector<16x16xf32>
    %39 = arith.addf %38, %6 : vector<16x16xf32>
    %cst_15 = arith.constant dense<0xFF800000> : vector<16xf32>
    %40 = vector.multi_reduction <maximumf>, %39, %cst_15 [1] : vector<16x16xf32> to vector<16xf32>
    %41 = vector.shape_cast %40 : vector<16xf32> to vector<16x1xf32>
    %42 = vector.broadcast %41 : vector<16x1xf32> to vector<16x16xf32>
    %43 = arith.subf %39, %42 : vector<16x16xf32>
    %44 = math.exp %43 : vector<16x16xf32>
    %cst_16 = arith.constant dense<0.000000e+00> : vector<16xf32>
    %45 = vector.multi_reduction <add>, %44, %cst_16 [1] : vector<16x16xf32> to vector<16xf32>
    %46 = vector.shape_cast %45 : vector<16xf32> to vector<16x1xf32>
    %47 = vector.broadcast %46 : vector<16x1xf32> to vector<16x16xf32>
    %48 = arith.divf %44, %47 : vector<16x16xf32>
    %49 = arith.truncf %48 : vector<16x16xf32> to vector<16x16xbf16>
    %cst_17 = arith.constant dense<0.000000e+00> : vector<16x8xf32>
    %50 = tpu.matmul %49, %37, %cst_17 {dimension_numbers = #tpu.dot_dimension_numbers<[1], [0], [0], [1], [0, 0, 1, 1], [], []>} : vector<16x16xbf16>, vector<16x8xbf16>, vector<16x8xf32> -> vector<16x8xf32>
    %51 = vector.extract_strided_slice %12 {offsets = [0, 16], sizes = [16, 8], strides = [1, 1]} : vector<16x96xf32> to vector<16x8xf32>
    %52 = arith.truncf %51 : vector<16x8xf32> to vector<16x8xbf16>
    %53 = vector.extract_strided_slice %12 {offsets = [0, 48], sizes = [16, 8], strides = [1, 1]} : vector<16x96xf32> to vector<16x8xf32>
    %54 = arith.truncf %53 : vector<16x8xf32> to vector<16x8xbf16>
    %55 = vector.extract_strided_slice %12 {offsets = [0, 80], sizes = [16, 8], strides = [1, 1]} : vector<16x96xf32> to vector<16x8xf32>
    %56 = arith.truncf %55 : vector<16x8xf32> to vector<16x8xbf16>
    %cst_18 = arith.constant dense<0.000000e+00> : vector<16x16xf32>
    %57 = tpu.matmul %52, %54, %cst_18 {dimension_numbers = #tpu.dot_dimension_numbers<[1], [1], [0], [0], [0, 0, 1, 0], [], []>} : vector<16x8xbf16>, vector<16x8xbf16>, vector<16x16xf32> -> vector<16x16xf32>
    %58 = arith.addf %57, %6 : vector<16x16xf32>
    %cst_19 = arith.constant dense<0xFF800000> : vector<16xf32>
    %59 = vector.multi_reduction <maximumf>, %58, %cst_19 [1] : vector<16x16xf32> to vector<16xf32>
    %60 = vector.shape_cast %59 : vector<16xf32> to vector<16x1xf32>
    %61 = vector.broadcast %60 : vector<16x1xf32> to vector<16x16xf32>
    %62 = arith.subf %58, %61 : vector<16x16xf32>
    %63 = math.exp %62 : vector<16x16xf32>
    %cst_20 = arith.constant dense<0.000000e+00> : vector<16xf32>
    %64 = vector.multi_reduction <add>, %63, %cst_20 [1] : vector<16x16xf32> to vector<16xf32>
    %65 = vector.shape_cast %64 : vector<16xf32> to vector<16x1xf32>
    %66 = vector.broadcast %65 : vector<16x1xf32> to vector<16x16xf32>
    %67 = arith.divf %63, %66 : vector<16x16xf32>
    %68 = arith.truncf %67 : vector<16x16xf32> to vector<16x16xbf16>
    %cst_21 = arith.constant dense<0.000000e+00> : vector<16x8xf32>
    %69 = tpu.matmul %68, %56, %cst_21 {dimension_numbers = #tpu.dot_dimension_numbers<[1], [0], [0], [1], [0, 0, 1, 1], [], []>} : vector<16x16xbf16>, vector<16x8xbf16>, vector<16x8xf32> -> vector<16x8xf32>
    %70 = vector.extract_strided_slice %12 {offsets = [0, 24], sizes = [16, 8], strides = [1, 1]} : vector<16x96xf32> to vector<16x8xf32>
    %71 = arith.truncf %70 : vector<16x8xf32> to vector<16x8xbf16>
    %72 = vector.extract_strided_slice %12 {offsets = [0, 56], sizes = [16, 8], strides = [1, 1]} : vector<16x96xf32> to vector<16x8xf32>
    %73 = arith.truncf %72 : vector<16x8xf32> to vector<16x8xbf16>
    %74 = vector.extract_strided_slice %12 {offsets = [0, 88], sizes = [16, 8], strides = [1, 1]} : vector<16x96xf32> to vector<16x8xf32>
    %75 = arith.truncf %74 : vector<16x8xf32> to vector<16x8xbf16>
    %cst_22 = arith.constant dense<0.000000e+00> : vector<16x16xf32>
    %76 = tpu.matmul %71, %73, %cst_22 {dimension_numbers = #tpu.dot_dimension_numbers<[1], [1], [0], [0], [0, 0, 1, 0], [], []>} : vector<16x8xbf16>, vector<16x8xbf16>, vector<16x16xf32> -> vector<16x16xf32>
    %77 = arith.addf %76, %6 : vector<16x16xf32>
    %cst_23 = arith.constant dense<0xFF800000> : vector<16xf32>
    %78 = vector.multi_reduction <maximumf>, %77, %cst_23 [1] : vector<16x16xf32> to vector<16xf32>
    %79 = vector.shape_cast %78 : vector<16xf32> to vector<16x1xf32>
    %80 = vector.broadcast %79 : vector<16x1xf32> to vector<16x16xf32>
    %81 = arith.subf %77, %80 : vector<16x16xf32>
    %82 = math.exp %81 : vector<16x16xf32>
    %cst_24 = arith.constant dense<0.000000e+00> : vector<16xf32>
    %83 = vector.multi_reduction <add>, %82, %cst_24 [1] : vector<16x16xf32> to vector<16xf32>
    %84 = vector.shape_cast %83 : vector<16xf32> to vector<16x1xf32>
    %85 = vector.broadcast %84 : vector<16x1xf32> to vector<16x16xf32>
    %86 = arith.divf %82, %85 : vector<16x16xf32>
    %87 = arith.truncf %86 : vector<16x16xf32> to vector<16x16xbf16>
    %cst_25 = arith.constant dense<0.000000e+00> : vector<16x8xf32>
    %88 = tpu.matmul %87, %75, %cst_25 {dimension_numbers = #tpu.dot_dimension_numbers<[1], [0], [0], [1], [0, 0, 1, 1], [], []>} : vector<16x16xbf16>, vector<16x8xbf16>, vector<16x8xf32> -> vector<16x8xf32>
    %89 = tpu.concatenate %31, %50, %69, %88 in 1 : vector<16x8xf32>, vector<16x8xf32>, vector<16x8xf32>, vector<16x8xf32> -> vector<16x32xf32>
    %c48 = arith.constant 48 : index
    %c0_26 = arith.constant 0 : index
    %90 = vector.load %arg1[%c48, %c0_26] : memref<416x128xbf16, #tpu.memory_space<vmem>>, vector<32x32xbf16>
    %91 = arith.truncf %89 : vector<16x32xf32> to vector<16x32xbf16>
    %cst_27 = arith.constant dense<0.000000e+00> : vector<16x32xf32>
    %92 = tpu.matmul %91, %90, %cst_27 {dimension_numbers = #tpu.dot_dimension_numbers<[1], [0], [0], [1], [0, 0, 1, 1], [], []>} : vector<16x32xbf16>, vector<32x32xbf16>, vector<16x32xf32> -> vector<16x32xf32>
    %c40 = arith.constant 40 : index
    %c0_28 = arith.constant 0 : index
    %93 = vector.load %arg2[%c40, %c0_28] : memref<176x128xf32, #tpu.memory_space<vmem>>, vector<1x32xf32>
    %94 = vector.broadcast %93 : vector<1x32xf32> to vector<16x32xf32>
    %95 = arith.addf %92, %94 : vector<16x32xf32>
    %96 = arith.addf %5, %95 : vector<16x32xf32>
    %c48_29 = arith.constant 48 : index
    %c0_30 = arith.constant 0 : index
    %97 = vector.load %arg2[%c48_29, %c0_30] : memref<176x128xf32, #tpu.memory_space<vmem>>, vector<1x32xf32>
    %c56 = arith.constant 56 : index
    %c0_31 = arith.constant 0 : index
    %98 = vector.load %arg2[%c56, %c0_31] : memref<176x128xf32, #tpu.memory_space<vmem>>, vector<1x32xf32>
    %cst_32 = arith.constant dense<0.000000e+00> : vector<16xf32>
    %99 = vector.multi_reduction <add>, %96, %cst_32 [1] : vector<16x32xf32> to vector<16xf32>
    %100 = vector.shape_cast %99 : vector<16xf32> to vector<16x1xf32>
    %cst_33 = arith.constant 3.200000e+01 : f32
    %101 = vector.broadcast %cst_33 : f32 to vector<16x1xf32>
    %102 = arith.divf %100, %101 : vector<16x1xf32>
    %103 = vector.broadcast %102 : vector<16x1xf32> to vector<16x32xf32>
    %104 = arith.subf %96, %103 : vector<16x32xf32>
    %105 = arith.mulf %104, %104 : vector<16x32xf32>
    %cst_34 = arith.constant dense<0.000000e+00> : vector<16xf32>
    %106 = vector.multi_reduction <add>, %105, %cst_34 [1] : vector<16x32xf32> to vector<16xf32>
    %107 = vector.shape_cast %106 : vector<16xf32> to vector<16x1xf32>
    %cst_35 = arith.constant 3.200000e+01 : f32
    %108 = vector.broadcast %cst_35 : f32 to vector<16x1xf32>
    %109 = arith.divf %107, %108 : vector<16x1xf32>
    %110 = vector.broadcast %102 : vector<16x1xf32> to vector<16x32xf32>
    %111 = arith.subf %96, %110 : vector<16x32xf32>
    %cst_36 = arith.constant 9.99999974E-6 : f32
    %112 = vector.broadcast %cst_36 : f32 to vector<16x1xf32>
    %113 = arith.addf %109, %112 : vector<16x1xf32>
    %114 = math.rsqrt %113 : vector<16x1xf32>
    %115 = vector.broadcast %114 : vector<16x1xf32> to vector<16x32xf32>
    %116 = arith.mulf %111, %115 : vector<16x32xf32>
    %117 = vector.broadcast %97 : vector<1x32xf32> to vector<16x32xf32>
    %118 = arith.mulf %116, %117 : vector<16x32xf32>
    %119 = vector.broadcast %98 : vector<1x32xf32> to vector<16x32xf32>
    %120 = arith.addf %118, %119 : vector<16x32xf32>
    %c80 = arith.constant 80 : index
    %c0_37 = arith.constant 0 : index
    %121 = vector.load %arg1[%c80, %c0_37] : memref<416x128xbf16, #tpu.memory_space<vmem>>, vector<32x64xbf16>
    %122 = arith.truncf %120 : vector<16x32xf32> to vector<16x32xbf16>
    %cst_38 = arith.constant dense<0.000000e+00> : vector<16x64xf32>
    %123 = tpu.matmul %122, %121, %cst_38 {dimension_numbers = #tpu.dot_dimension_numbers<[1], [0], [0], [1], [0, 0, 1, 1], [], []>} : vector<16x32xbf16>, vector<32x64xbf16>, vector<16x64xf32> -> vector<16x64xf32>
    %c64 = arith.constant 64 : index
    %c0_39 = arith.constant 0 : index
    %124 = vector.load %arg2[%c64, %c0_39] : memref<176x128xf32, #tpu.memory_space<vmem>>, vector<1x64xf32>
    %125 = vector.broadcast %124 : vector<1x64xf32> to vector<16x64xf32>
    %126 = arith.addf %123, %125 : vector<16x64xf32>
    %cst_40 = arith.constant 0.000000e+00 : f32
    %127 = vector.broadcast %cst_40 : f32 to vector<16x64xf32>
    %128 = arith.maximumf %126, %127 : vector<16x64xf32>
    %c112 = arith.constant 112 : index
    %c0_41 = arith.constant 0 : index
    %129 = vector.load %arg1[%c112, %c0_41] : memref<416x128xbf16, #tpu.memory_space<vmem>>, vector<64x32xbf16>
    %130 = arith.truncf %128 : vector<16x64xf32> to vector<16x64xbf16>
    %cst_42 = arith.constant dense<0.000000e+00> : vector<16x32xf32>
    %131 = tpu.matmul %130, %129, %cst_42 {dimension_numbers = #tpu.dot_dimension_numbers<[1], [0], [0], [1], [0, 0, 1, 1], [], []>} : vector<16x64xbf16>, vector<64x32xbf16>, vector<16x32xf32> -> vector<16x32xf32>
    %c72 = arith.constant 72 : index
    %c0_43 = arith.constant 0 : index
    %132 = vector.load %arg2[%c72, %c0_43] : memref<176x128xf32, #tpu.memory_space<vmem>>, vector<1x32xf32>
    %133 = vector.broadcast %132 : vector<1x32xf32> to vector<16x32xf32>
    %134 = arith.addf %131, %133 : vector<16x32xf32>
    %135 = arith.addf %120, %134 : vector<16x32xf32>
    %c80_44 = arith.constant 80 : index
    %c0_45 = arith.constant 0 : index
    %136 = vector.load %arg2[%c80_44, %c0_45] : memref<176x128xf32, #tpu.memory_space<vmem>>, vector<1x32xf32>
    %c88 = arith.constant 88 : index
    %c0_46 = arith.constant 0 : index
    %137 = vector.load %arg2[%c88, %c0_46] : memref<176x128xf32, #tpu.memory_space<vmem>>, vector<1x32xf32>
    %cst_47 = arith.constant dense<0.000000e+00> : vector<16xf32>
    %138 = vector.multi_reduction <add>, %135, %cst_47 [1] : vector<16x32xf32> to vector<16xf32>
    %139 = vector.shape_cast %138 : vector<16xf32> to vector<16x1xf32>
    %cst_48 = arith.constant 3.200000e+01 : f32
    %140 = vector.broadcast %cst_48 : f32 to vector<16x1xf32>
    %141 = arith.divf %139, %140 : vector<16x1xf32>
    %142 = vector.broadcast %141 : vector<16x1xf32> to vector<16x32xf32>
    %143 = arith.subf %135, %142 : vector<16x32xf32>
    %144 = arith.mulf %143, %143 : vector<16x32xf32>
    %cst_49 = arith.constant dense<0.000000e+00> : vector<16xf32>
    %145 = vector.multi_reduction <add>, %144, %cst_49 [1] : vector<16x32xf32> to vector<16xf32>
    %146 = vector.shape_cast %145 : vector<16xf32> to vector<16x1xf32>
    %cst_50 = arith.constant 3.200000e+01 : f32
    %147 = vector.broadcast %cst_50 : f32 to vector<16x1xf32>
    %148 = arith.divf %146, %147 : vector<16x1xf32>
    %149 = vector.broadcast %141 : vector<16x1xf32> to vector<16x32xf32>
    %150 = arith.subf %135, %149 : vector<16x32xf32>
    %cst_51 = arith.constant 9.99999974E-6 : f32
    %151 = vector.broadcast %cst_51 : f32 to vector<16x1xf32>
    %152 = arith.addf %148, %151 : vector<16x1xf32>
    %153 = math.rsqrt %152 : vector<16x1xf32>
    %154 = vector.broadcast %153 : vector<16x1xf32> to vector<16x32xf32>
    %155 = arith.mulf %150, %154 : vector<16x32xf32>
    %156 = vector.broadcast %136 : vector<1x32xf32> to vector<16x32xf32>
    %157 = arith.mulf %155, %156 : vector<16x32xf32>
    %158 = vector.broadcast %137 : vector<1x32xf32> to vector<16x32xf32>
    %159 = arith.addf %157, %158 : vector<16x32xf32>
    %c176 = arith.constant 176 : index
    %c0_52 = arith.constant 0 : index
    %160 = vector.load %arg1[%c176, %c0_52] : memref<416x128xbf16, #tpu.memory_space<vmem>>, vector<32x96xbf16>
    %161 = arith.truncf %159 : vector<16x32xf32> to vector<16x32xbf16>
    %cst_53 = arith.constant dense<0.000000e+00> : vector<16x96xf32>
    %162 = tpu.matmul %161, %160, %cst_53 {dimension_numbers = #tpu.dot_dimension_numbers<[1], [0], [0], [1], [0, 0, 1, 1], [], []>} : vector<16x32xbf16>, vector<32x96xbf16>, vector<16x96xf32> -> vector<16x96xf32>
    %c96 = arith.constant 96 : index
    %c0_54 = arith.constant 0 : index
    %163 = vector.load %arg2[%c96, %c0_54] : memref<176x128xf32, #tpu.memory_space<vmem>>, vector<1x96xf32>
    %164 = vector.broadcast %163 : vector<1x96xf32> to vector<16x96xf32>
    %165 = arith.addf %162, %164 : vector<16x96xf32>
    %166 = vector.extract_strided_slice %165 {offsets = [0, 0], sizes = [16, 8], strides = [1, 1]} : vector<16x96xf32> to vector<16x8xf32>
    %167 = arith.truncf %166 : vector<16x8xf32> to vector<16x8xbf16>
    %168 = vector.extract_strided_slice %165 {offsets = [0, 32], sizes = [16, 8], strides = [1, 1]} : vector<16x96xf32> to vector<16x8xf32>
    %169 = arith.truncf %168 : vector<16x8xf32> to vector<16x8xbf16>
    %170 = vector.extract_strided_slice %165 {offsets = [0, 64], sizes = [16, 8], strides = [1, 1]} : vector<16x96xf32> to vector<16x8xf32>
    %171 = arith.truncf %170 : vector<16x8xf32> to vector<16x8xbf16>
    %cst_55 = arith.constant dense<0.000000e+00> : vector<16x16xf32>
    %172 = tpu.matmul %167, %169, %cst_55 {dimension_numbers = #tpu.dot_dimension_numbers<[1], [1], [0], [0], [0, 0, 1, 0], [], []>} : vector<16x8xbf16>, vector<16x8xbf16>, vector<16x16xf32> -> vector<16x16xf32>
    %173 = arith.addf %172, %6 : vector<16x16xf32>
    %cst_56 = arith.constant dense<0xFF800000> : vector<16xf32>
    %174 = vector.multi_reduction <maximumf>, %173, %cst_56 [1] : vector<16x16xf32> to vector<16xf32>
    %175 = vector.shape_cast %174 : vector<16xf32> to vector<16x1xf32>
    %176 = vector.broadcast %175 : vector<16x1xf32> to vector<16x16xf32>
    %177 = arith.subf %173, %176 : vector<16x16xf32>
    %178 = math.exp %177 : vector<16x16xf32>
    %cst_57 = arith.constant dense<0.000000e+00> : vector<16xf32>
    %179 = vector.multi_reduction <add>, %178, %cst_57 [1] : vector<16x16xf32> to vector<16xf32>
    %180 = vector.shape_cast %179 : vector<16xf32> to vector<16x1xf32>
    %181 = vector.broadcast %180 : vector<16x1xf32> to vector<16x16xf32>
    %182 = arith.divf %178, %181 : vector<16x16xf32>
    %183 = arith.truncf %182 : vector<16x16xf32> to vector<16x16xbf16>
    %cst_58 = arith.constant dense<0.000000e+00> : vector<16x8xf32>
    %184 = tpu.matmul %183, %171, %cst_58 {dimension_numbers = #tpu.dot_dimension_numbers<[1], [0], [0], [1], [0, 0, 1, 1], [], []>} : vector<16x16xbf16>, vector<16x8xbf16>, vector<16x8xf32> -> vector<16x8xf32>
    %185 = vector.extract_strided_slice %165 {offsets = [0, 8], sizes = [16, 8], strides = [1, 1]} : vector<16x96xf32> to vector<16x8xf32>
    %186 = arith.truncf %185 : vector<16x8xf32> to vector<16x8xbf16>
    %187 = vector.extract_strided_slice %165 {offsets = [0, 40], sizes = [16, 8], strides = [1, 1]} : vector<16x96xf32> to vector<16x8xf32>
    %188 = arith.truncf %187 : vector<16x8xf32> to vector<16x8xbf16>
    %189 = vector.extract_strided_slice %165 {offsets = [0, 72], sizes = [16, 8], strides = [1, 1]} : vector<16x96xf32> to vector<16x8xf32>
    %190 = arith.truncf %189 : vector<16x8xf32> to vector<16x8xbf16>
    %cst_59 = arith.constant dense<0.000000e+00> : vector<16x16xf32>
    %191 = tpu.matmul %186, %188, %cst_59 {dimension_numbers = #tpu.dot_dimension_numbers<[1], [1], [0], [0], [0, 0, 1, 0], [], []>} : vector<16x8xbf16>, vector<16x8xbf16>, vector<16x16xf32> -> vector<16x16xf32>
    %192 = arith.addf %191, %6 : vector<16x16xf32>
    %cst_60 = arith.constant dense<0xFF800000> : vector<16xf32>
    %193 = vector.multi_reduction <maximumf>, %192, %cst_60 [1] : vector<16x16xf32> to vector<16xf32>
    %194 = vector.shape_cast %193 : vector<16xf32> to vector<16x1xf32>
    %195 = vector.broadcast %194 : vector<16x1xf32> to vector<16x16xf32>
    %196 = arith.subf %192, %195 : vector<16x16xf32>
    %197 = math.exp %196 : vector<16x16xf32>
    %cst_61 = arith.constant dense<0.000000e+00> : vector<16xf32>
    %198 = vector.multi_reduction <add>, %197, %cst_61 [1] : vector<16x16xf32> to vector<16xf32>
    %199 = vector.shape_cast %198 : vector<16xf32> to vector<16x1xf32>
    %200 = vector.broadcast %199 : vector<16x1xf32> to vector<16x16xf32>
    %201 = arith.divf %197, %200 : vector<16x16xf32>
    %202 = arith.truncf %201 : vector<16x16xf32> to vector<16x16xbf16>
    %cst_62 = arith.constant dense<0.000000e+00> : vector<16x8xf32>
    %203 = tpu.matmul %202, %190, %cst_62 {dimension_numbers = #tpu.dot_dimension_numbers<[1], [0], [0], [1], [0, 0, 1, 1], [], []>} : vector<16x16xbf16>, vector<16x8xbf16>, vector<16x8xf32> -> vector<16x8xf32>
    %204 = vector.extract_strided_slice %165 {offsets = [0, 16], sizes = [16, 8], strides = [1, 1]} : vector<16x96xf32> to vector<16x8xf32>
    %205 = arith.truncf %204 : vector<16x8xf32> to vector<16x8xbf16>
    %206 = vector.extract_strided_slice %165 {offsets = [0, 48], sizes = [16, 8], strides = [1, 1]} : vector<16x96xf32> to vector<16x8xf32>
    %207 = arith.truncf %206 : vector<16x8xf32> to vector<16x8xbf16>
    %208 = vector.extract_strided_slice %165 {offsets = [0, 80], sizes = [16, 8], strides = [1, 1]} : vector<16x96xf32> to vector<16x8xf32>
    %209 = arith.truncf %208 : vector<16x8xf32> to vector<16x8xbf16>
    %cst_63 = arith.constant dense<0.000000e+00> : vector<16x16xf32>
    %210 = tpu.matmul %205, %207, %cst_63 {dimension_numbers = #tpu.dot_dimension_numbers<[1], [1], [0], [0], [0, 0, 1, 0], [], []>} : vector<16x8xbf16>, vector<16x8xbf16>, vector<16x16xf32> -> vector<16x16xf32>
    %211 = arith.addf %210, %6 : vector<16x16xf32>
    %cst_64 = arith.constant dense<0xFF800000> : vector<16xf32>
    %212 = vector.multi_reduction <maximumf>, %211, %cst_64 [1] : vector<16x16xf32> to vector<16xf32>
    %213 = vector.shape_cast %212 : vector<16xf32> to vector<16x1xf32>
    %214 = vector.broadcast %213 : vector<16x1xf32> to vector<16x16xf32>
    %215 = arith.subf %211, %214 : vector<16x16xf32>
    %216 = math.exp %215 : vector<16x16xf32>
    %cst_65 = arith.constant dense<0.000000e+00> : vector<16xf32>
    %217 = vector.multi_reduction <add>, %216, %cst_65 [1] : vector<16x16xf32> to vector<16xf32>
    %218 = vector.shape_cast %217 : vector<16xf32> to vector<16x1xf32>
    %219 = vector.broadcast %218 : vector<16x1xf32> to vector<16x16xf32>
    %220 = arith.divf %216, %219 : vector<16x16xf32>
    %221 = arith.truncf %220 : vector<16x16xf32> to vector<16x16xbf16>
    %cst_66 = arith.constant dense<0.000000e+00> : vector<16x8xf32>
    %222 = tpu.matmul %221, %209, %cst_66 {dimension_numbers = #tpu.dot_dimension_numbers<[1], [0], [0], [1], [0, 0, 1, 1], [], []>} : vector<16x16xbf16>, vector<16x8xbf16>, vector<16x8xf32> -> vector<16x8xf32>
    %223 = vector.extract_strided_slice %165 {offsets = [0, 24], sizes = [16, 8], strides = [1, 1]} : vector<16x96xf32> to vector<16x8xf32>
    %224 = arith.truncf %223 : vector<16x8xf32> to vector<16x8xbf16>
    %225 = vector.extract_strided_slice %165 {offsets = [0, 56], sizes = [16, 8], strides = [1, 1]} : vector<16x96xf32> to vector<16x8xf32>
    %226 = arith.truncf %225 : vector<16x8xf32> to vector<16x8xbf16>
    %227 = vector.extract_strided_slice %165 {offsets = [0, 88], sizes = [16, 8], strides = [1, 1]} : vector<16x96xf32> to vector<16x8xf32>
    %228 = arith.truncf %227 : vector<16x8xf32> to vector<16x8xbf16>
    %cst_67 = arith.constant dense<0.000000e+00> : vector<16x16xf32>
    %229 = tpu.matmul %224, %226, %cst_67 {dimension_numbers = #tpu.dot_dimension_numbers<[1], [1], [0], [0], [0, 0, 1, 0], [], []>} : vector<16x8xbf16>, vector<16x8xbf16>, vector<16x16xf32> -> vector<16x16xf32>
    %230 = arith.addf %229, %6 : vector<16x16xf32>
    %cst_68 = arith.constant dense<0xFF800000> : vector<16xf32>
    %231 = vector.multi_reduction <maximumf>, %230, %cst_68 [1] : vector<16x16xf32> to vector<16xf32>
    %232 = vector.shape_cast %231 : vector<16xf32> to vector<16x1xf32>
    %233 = vector.broadcast %232 : vector<16x1xf32> to vector<16x16xf32>
    %234 = arith.subf %230, %233 : vector<16x16xf32>
    %235 = math.exp %234 : vector<16x16xf32>
    %cst_69 = arith.constant dense<0.000000e+00> : vector<16xf32>
    %236 = vector.multi_reduction <add>, %235, %cst_69 [1] : vector<16x16xf32> to vector<16xf32>
    %237 = vector.shape_cast %236 : vector<16xf32> to vector<16x1xf32>
    %238 = vector.broadcast %237 : vector<16x1xf32> to vector<16x16xf32>
    %239 = arith.divf %235, %238 : vector<16x16xf32>
    %240 = arith.truncf %239 : vector<16x16xf32> to vector<16x16xbf16>
    %cst_70 = arith.constant dense<0.000000e+00> : vector<16x8xf32>
    %241 = tpu.matmul %240, %228, %cst_70 {dimension_numbers = #tpu.dot_dimension_numbers<[1], [0], [0], [1], [0, 0, 1, 1], [], []>} : vector<16x16xbf16>, vector<16x8xbf16>, vector<16x8xf32> -> vector<16x8xf32>
    %242 = tpu.concatenate %184, %203, %222, %241 in 1 : vector<16x8xf32>, vector<16x8xf32>, vector<16x8xf32>, vector<16x8xf32> -> vector<16x32xf32>
    %c208 = arith.constant 208 : index
    %c0_71 = arith.constant 0 : index
    %243 = vector.load %arg1[%c208, %c0_71] : memref<416x128xbf16, #tpu.memory_space<vmem>>, vector<32x32xbf16>
    %244 = arith.truncf %242 : vector<16x32xf32> to vector<16x32xbf16>
    %cst_72 = arith.constant dense<0.000000e+00> : vector<16x32xf32>
    %245 = tpu.matmul %244, %243, %cst_72 {dimension_numbers = #tpu.dot_dimension_numbers<[1], [0], [0], [1], [0, 0, 1, 1], [], []>} : vector<16x32xbf16>, vector<32x32xbf16>, vector<16x32xf32> -> vector<16x32xf32>
    %c104 = arith.constant 104 : index
    %c0_73 = arith.constant 0 : index
    %246 = vector.load %arg2[%c104, %c0_73] : memref<176x128xf32, #tpu.memory_space<vmem>>, vector<1x32xf32>
    %247 = vector.broadcast %246 : vector<1x32xf32> to vector<16x32xf32>
    %248 = arith.addf %245, %247 : vector<16x32xf32>
    %249 = arith.addf %159, %248 : vector<16x32xf32>
    %c112_74 = arith.constant 112 : index
    %c0_75 = arith.constant 0 : index
    %250 = vector.load %arg2[%c112_74, %c0_75] : memref<176x128xf32, #tpu.memory_space<vmem>>, vector<1x32xf32>
    %c120 = arith.constant 120 : index
    %c0_76 = arith.constant 0 : index
    %251 = vector.load %arg2[%c120, %c0_76] : memref<176x128xf32, #tpu.memory_space<vmem>>, vector<1x32xf32>
    %cst_77 = arith.constant dense<0.000000e+00> : vector<16xf32>
    %252 = vector.multi_reduction <add>, %249, %cst_77 [1] : vector<16x32xf32> to vector<16xf32>
    %253 = vector.shape_cast %252 : vector<16xf32> to vector<16x1xf32>
    %cst_78 = arith.constant 3.200000e+01 : f32
    %254 = vector.broadcast %cst_78 : f32 to vector<16x1xf32>
    %255 = arith.divf %253, %254 : vector<16x1xf32>
    %256 = vector.broadcast %255 : vector<16x1xf32> to vector<16x32xf32>
    %257 = arith.subf %249, %256 : vector<16x32xf32>
    %258 = arith.mulf %257, %257 : vector<16x32xf32>
    %cst_79 = arith.constant dense<0.000000e+00> : vector<16xf32>
    %259 = vector.multi_reduction <add>, %258, %cst_79 [1] : vector<16x32xf32> to vector<16xf32>
    %260 = vector.shape_cast %259 : vector<16xf32> to vector<16x1xf32>
    %cst_80 = arith.constant 3.200000e+01 : f32
    %261 = vector.broadcast %cst_80 : f32 to vector<16x1xf32>
    %262 = arith.divf %260, %261 : vector<16x1xf32>
    %263 = vector.broadcast %255 : vector<16x1xf32> to vector<16x32xf32>
    %264 = arith.subf %249, %263 : vector<16x32xf32>
    %cst_81 = arith.constant 9.99999974E-6 : f32
    %265 = vector.broadcast %cst_81 : f32 to vector<16x1xf32>
    %266 = arith.addf %262, %265 : vector<16x1xf32>
    %267 = math.rsqrt %266 : vector<16x1xf32>
    %268 = vector.broadcast %267 : vector<16x1xf32> to vector<16x32xf32>
    %269 = arith.mulf %264, %268 : vector<16x32xf32>
    %270 = vector.broadcast %250 : vector<1x32xf32> to vector<16x32xf32>
    %271 = arith.mulf %269, %270 : vector<16x32xf32>
    %272 = vector.broadcast %251 : vector<1x32xf32> to vector<16x32xf32>
    %273 = arith.addf %271, %272 : vector<16x32xf32>
    %c240 = arith.constant 240 : index
    %c0_82 = arith.constant 0 : index
    %274 = vector.load %arg1[%c240, %c0_82] : memref<416x128xbf16, #tpu.memory_space<vmem>>, vector<32x64xbf16>
    %275 = arith.truncf %273 : vector<16x32xf32> to vector<16x32xbf16>
    %cst_83 = arith.constant dense<0.000000e+00> : vector<16x64xf32>
    %276 = tpu.matmul %275, %274, %cst_83 {dimension_numbers = #tpu.dot_dimension_numbers<[1], [0], [0], [1], [0, 0, 1, 1], [], []>} : vector<16x32xbf16>, vector<32x64xbf16>, vector<16x64xf32> -> vector<16x64xf32>
    %c128 = arith.constant 128 : index
    %c0_84 = arith.constant 0 : index
    %277 = vector.load %arg2[%c128, %c0_84] : memref<176x128xf32, #tpu.memory_space<vmem>>, vector<1x64xf32>
    %278 = vector.broadcast %277 : vector<1x64xf32> to vector<16x64xf32>
    %279 = arith.addf %276, %278 : vector<16x64xf32>
    %cst_85 = arith.constant 0.000000e+00 : f32
    %280 = vector.broadcast %cst_85 : f32 to vector<16x64xf32>
    %281 = arith.maximumf %279, %280 : vector<16x64xf32>
    %c272 = arith.constant 272 : index
    %c0_86 = arith.constant 0 : index
    %282 = vector.load %arg1[%c272, %c0_86] : memref<416x128xbf16, #tpu.memory_space<vmem>>, vector<64x32xbf16>
    %283 = arith.truncf %281 : vector<16x64xf32> to vector<16x64xbf16>
    %cst_87 = arith.constant dense<0.000000e+00> : vector<16x32xf32>
    %284 = tpu.matmul %283, %282, %cst_87 {dimension_numbers = #tpu.dot_dimension_numbers<[1], [0], [0], [1], [0, 0, 1, 1], [], []>} : vector<16x64xbf16>, vector<64x32xbf16>, vector<16x32xf32> -> vector<16x32xf32>
    %c136 = arith.constant 136 : index
    %c0_88 = arith.constant 0 : index
    %285 = vector.load %arg2[%c136, %c0_88] : memref<176x128xf32, #tpu.memory_space<vmem>>, vector<1x32xf32>
    %286 = vector.broadcast %285 : vector<1x32xf32> to vector<16x32xf32>
    %287 = arith.addf %284, %286 : vector<16x32xf32>
    %288 = arith.addf %273, %287 : vector<16x32xf32>
    %c144 = arith.constant 144 : index
    %c0_89 = arith.constant 0 : index
    %289 = vector.load %arg2[%c144, %c0_89] : memref<176x128xf32, #tpu.memory_space<vmem>>, vector<1x32xf32>
    %c152 = arith.constant 152 : index
    %c0_90 = arith.constant 0 : index
    %290 = vector.load %arg2[%c152, %c0_90] : memref<176x128xf32, #tpu.memory_space<vmem>>, vector<1x32xf32>
    %cst_91 = arith.constant dense<0.000000e+00> : vector<16xf32>
    %291 = vector.multi_reduction <add>, %288, %cst_91 [1] : vector<16x32xf32> to vector<16xf32>
    %292 = vector.shape_cast %291 : vector<16xf32> to vector<16x1xf32>
    %cst_92 = arith.constant 3.200000e+01 : f32
    %293 = vector.broadcast %cst_92 : f32 to vector<16x1xf32>
    %294 = arith.divf %292, %293 : vector<16x1xf32>
    %295 = vector.broadcast %294 : vector<16x1xf32> to vector<16x32xf32>
    %296 = arith.subf %288, %295 : vector<16x32xf32>
    %297 = arith.mulf %296, %296 : vector<16x32xf32>
    %cst_93 = arith.constant dense<0.000000e+00> : vector<16xf32>
    %298 = vector.multi_reduction <add>, %297, %cst_93 [1] : vector<16x32xf32> to vector<16xf32>
    %299 = vector.shape_cast %298 : vector<16xf32> to vector<16x1xf32>
    %cst_94 = arith.constant 3.200000e+01 : f32
    %300 = vector.broadcast %cst_94 : f32 to vector<16x1xf32>
    %301 = arith.divf %299, %300 : vector<16x1xf32>
    %302 = vector.broadcast %294 : vector<16x1xf32> to vector<16x32xf32>
    %303 = arith.subf %288, %302 : vector<16x32xf32>
    %cst_95 = arith.constant 9.99999974E-6 : f32
    %304 = vector.broadcast %cst_95 : f32 to vector<16x1xf32>
    %305 = arith.addf %301, %304 : vector<16x1xf32>
    %306 = math.rsqrt %305 : vector<16x1xf32>
    %307 = vector.broadcast %306 : vector<16x1xf32> to vector<16x32xf32>
    %308 = arith.mulf %303, %307 : vector<16x32xf32>
    %309 = vector.broadcast %289 : vector<1x32xf32> to vector<16x32xf32>
    %310 = arith.mulf %308, %309 : vector<16x32xf32>
    %311 = vector.broadcast %290 : vector<1x32xf32> to vector<16x32xf32>
    %312 = arith.addf %310, %311 : vector<16x32xf32>
    %c336 = arith.constant 336 : index
    %c0_96 = arith.constant 0 : index
    %313 = vector.load %arg1[%c336, %c0_96] : memref<416x128xbf16, #tpu.memory_space<vmem>>, vector<2x16xbf16>
    %314 = arith.truncf %312 : vector<16x32xf32> to vector<16x32xbf16>
    %cst_97 = arith.constant dense<0.000000e+00> : vector<2x32xf32>
    %315 = tpu.matmul %313, %314, %cst_97 {dimension_numbers = #tpu.dot_dimension_numbers<[1], [0], [0], [1], [0, 0, 1, 1], [], []>} : vector<2x16xbf16>, vector<16x32xbf16>, vector<2x32xf32> -> vector<2x32xf32>
    %c352 = arith.constant 352 : index
    %c0_98 = arith.constant 0 : index
    %316 = vector.load %arg1[%c352, %c0_98] : memref<416x128xbf16, #tpu.memory_space<vmem>>, vector<32x32xbf16>
    %317 = arith.truncf %315 : vector<2x32xf32> to vector<2x32xbf16>
    %cst_99 = arith.constant dense<0.000000e+00> : vector<2x32xf32>
    %318 = tpu.matmul %317, %316, %cst_99 {dimension_numbers = #tpu.dot_dimension_numbers<[1], [0], [0], [1], [0, 0, 1, 1], [], []>} : vector<2x32xbf16>, vector<32x32xbf16>, vector<2x32xf32> -> vector<2x32xf32>
    %c160 = arith.constant 160 : index
    %c0_100 = arith.constant 0 : index
    %319 = vector.load %arg2[%c160, %c0_100] : memref<176x128xf32, #tpu.memory_space<vmem>>, vector<1x32xf32>
    %320 = vector.broadcast %319 : vector<1x32xf32> to vector<2x32xf32>
    %321 = arith.addf %318, %320 : vector<2x32xf32>
    %cst_101 = arith.constant 0.000000e+00 : f32
    %322 = vector.broadcast %cst_101 : f32 to vector<2x32xf32>
    %323 = arith.maximumf %321, %322 : vector<2x32xf32>
    %c384 = arith.constant 384 : index
    %c0_102 = arith.constant 0 : index
    %324 = vector.load %arg1[%c384, %c0_102] : memref<416x128xbf16, #tpu.memory_space<vmem>>, vector<32x9xbf16>
    %325 = arith.truncf %323 : vector<2x32xf32> to vector<2x32xbf16>
    %cst_103 = arith.constant dense<0.000000e+00> : vector<2x9xf32>
    %326 = tpu.matmul %325, %324, %cst_103 {dimension_numbers = #tpu.dot_dimension_numbers<[1], [0], [0], [1], [0, 0, 1, 1], [], []>} : vector<2x32xbf16>, vector<32x9xbf16>, vector<2x9xf32> -> vector<2x9xf32>
    %c168 = arith.constant 168 : index
    %c0_104 = arith.constant 0 : index
    %327 = vector.load %arg2[%c168, %c0_104] : memref<176x128xf32, #tpu.memory_space<vmem>>, vector<1x9xf32>
    %328 = vector.broadcast %327 : vector<1x9xf32> to vector<2x9xf32>
    %329 = arith.addf %326, %328 : vector<2x9xf32>
    %c0_105 = arith.constant 0 : index
    %c0_106 = arith.constant 0 : index
    %330 = vector.load %arg3[%c0_105, %c0_106] : memref<2x9xf32, #tpu.memory_space<vmem>>, vector<2x9xf32>
    tpu.vector_store %arg3[%c0_105, %c0_106], %329 {strides = array<i32>} : memref<2x9xf32, #tpu.memory_space<vmem>>, vector<2x9xf32>,
    return
  }
}

</mosaic_0001>

<llo_original>
// kernel: forward.1
$region0: #{forward.1}
  #allocation0 [shape = 'u32[]', space=smem, size = 0x4, offset = 0x4, fixed_abs, tag = 'smem constant byte address 0x4 - core index']
  #allocation1 [shape = 'u32[144,128]{1,0:T(1,128)}', space=vmem, size = 0x12000, scoped, tag = 'internal scratch']
  %s0 = inlined_call_operand.hbm [shape: f32[16,16], index: 0, kind: input, shape index: {}]
  %s1 = inlined_call_operand.hbm [shape: bf16[416,128], index: 1, kind: input, shape index: {}]
  %s2 = inlined_call_operand.hbm [shape: f32[176,128], index: 2, kind: input, shape index: {}]
  %s3 = inlined_call_operand.vmem [shape: f32[2,9], index: 3, kind: output, shape index: {}]
  %s4 = sld [smem:[#allocation0]]
  $region34: #{forward.1} parent=0
    _
  %s6 = ssub.s32 1, %s4
  %s7 = scalar_select 0, %s6, %s4
  $region1: #{forward.1} parent=0
    #allocation2 [shape = 'u8[8192]{0}', space=vmem, size = 0x2000, scoped, tag = 'input window, operand 0, single buffered']
    #allocation3 [shape = 's32[1]{0}', space=sflag, size = 0x4, scoped, tag = 'scoped memory for forward.1']
    #allocation4 [shape = 'u8[106496]{0}', space=vmem, size = 0x1a000, scoped, tag = 'input window, operand 1, single buffered']
    #allocation5 [shape = 's32[1]{0}', space=sflag, size = 0x4, scoped, tag = 'scoped memory for forward.1']
    #allocation6 [shape = 'u8[90112]{0}', space=vmem, size = 0x16000, scoped, tag = 'input window, operand 2, single buffered']
    %8 = vsyncpa [#allocation3], 0
    %9 = vsyncpa [#allocation5], 0
    // Predicated region
    $region2: #{forward.1} parent=1 // pred_check
      _
    $region3: #{forward.1} parent=1 // pred_check_branch
      %11 = sbr.rel (0) target = $region5
    $region4: #{forward.1} parent=1 // pred_region
      %s13 = ssub.s32 256, 256
      %14 = vsyncadd [#allocation3], %s13
      %s15 = sshll.u32 [#allocation2], 4
      %s16 = int_to_ptr.vmem [resolvable:$true] %s15
      %21 = dma.hbm_to_vmem [thread:$0]  %s0, 256, %s16, [#allocation3], 128, 128, 8
    $region5: #{forward.1} parent=1 // pred_fallthru
      _
    // Predicated region
    $region6: #{forward.1} parent=1 // pred_check
      _
    $region7: #{forward.1} parent=1 // pred_check_branch
      %23 = sbr.rel (0) target = $region9
    $region8: #{forward.1} parent=1 // pred_region
      %s25 = ssub.s32 3328, 3328
      %26 = vsyncadd [#allocation5], %s25
      %s27 = sshll.u32 [#allocation4], 4
      %s28 = int_to_ptr.vmem [resolvable:$true] %s27
      %33 = dma.hbm_to_vmem [thread:$0]  %s1, 3328, %s28, [#allocation5], 64, 64, 4
    $region9: #{forward.1} parent=1 // pred_fallthru
      _
    // Predicated region
    $region10: #{forward.1} parent=1 // pred_check
      _
    $region11: #{forward.1} parent=1 // pred_check_branch
      %35 = sbr.rel (0) target = $region13
    $region12: #{forward.1} parent=1 // pred_region
      %s37 = ssub.s32 2816, 2816
      %38 = vsyncadd [#allocation5], %s37
      %s39 = sshll.u32 [#allocation6], 4
      %s40 = int_to_ptr.vmem [resolvable:$true] %s39
      %45 = dma.hbm_to_vmem [thread:$0]  %s2, 2816, %s40, [#allocation5], 128, 128, 8
    $region13: #{forward.1} parent=1 // pred_fallthru
      _
    // Predicated region
    $region14: #{forward.1} parent=1 // pred_check
      _
    $region15: #{forward.1} parent=1 // pred_check_branch
      %47 = sbr.rel (0) target = $region17
    $region16: #{forward.1} parent=1 // pred_region
      %48 = dma.done [#allocation3], 256
    $region17: #{forward.1} parent=1 // pred_fallthru
      _
    // Predicated region
    $region18: #{forward.1} parent=1 // pred_check
      _
    $region19: #{forward.1} parent=1 // pred_check_branch
      %50 = sbr.rel (0) target = $region21
    $region20: #{forward.1} parent=1 // pred_region
      %51 = dma.done [#allocation5], 3328
    $region21: #{forward.1} parent=1 // pred_fallthru
      _
    // Predicated region
    $region22: #{forward.1} parent=1 // pred_check
      _
    $region23: #{forward.1} parent=1 // pred_check_branch
      %53 = sbr.rel (0) target = $region25
    $region24: #{forward.1} parent=1 // pred_region
      %54 = dma.done [#allocation5], 2816
    $region25: #{forward.1} parent=1 // pred_fallthru
      _
    %v56 = vld [vmem:[#allocation2] sm:$0xff]
    %v57 = vld [vmem:[#allocation2 + $0x8] sm:$0xff]
    %v58 = vld [vmem:[#allocation4] sm:$0xf]
    %v59 = vld [vmem:[#allocation4 + $0x4] sm:$0xf]
    %v60 = vpack.c.bf16 %v57, %v56
    %v61 = vld [vmem:[#allocation6] sm:$0xff]
    %v62 = vld [vmem:[#allocation6 + $0x8] sm:$0xff]
    %v65 = vunpack.c.l.b16 %v58
    %v66 = vunpack.c.l.b16 %v59
    %v67 = vpack.c.b16 %v66, %v65
    %vm69 = vcmask 130048
    %v71 = vsel %vm69, %v60, 0
    %73 = vmatprep.subr.bf16.mxu0 0
    %74 = vmatpush1.bf16.msra.mxu0 %v67
    %75 = vmatprep.subr.bf16.mxu0 0
    %76 = vmatpush1.bf16.msra.mxu0 0
    %77 = vmatprep.subr.bf16.mxu0 0
    %78 = vmatpush1.bf16.msra.mxu0 0
    %79 = vmatprep.subr.bf16.mxu0 0
    %80 = vmatpush1.bf16.msra.mxu0 0
    %81 = vmatprep.subr.bf16.mxu0 0
    %82 = vmatpush1.bf16.msra.mxu0 0
    %83 = vmatprep.subr.bf16.mxu0 0
    %84 = vmatpush1.bf16.msra.mxu0 0
    %85 = vmatprep.subr.bf16.mxu0 0
    %86 = vmatpush1.bf16.msra.mxu0 0
    %87 = vmatprep.subr.bf16.mxu0 0
    %88 = vmatpush1.bf16.msra.mxu0 0
    %89 = vmatprep.subr.bf16.mxu0 0
    %90 = vmatpush1.bf16.msra.mxu0 0
    %91 = vmatprep.subr.bf16.mxu0 0
    %92 = vmatpush1.bf16.msra.mxu0 0
    %93 = vmatprep.subr.bf16.mxu0 0
    %94 = vmatpush1.bf16.msra.mxu0 0
    %95 = vmatprep.subr.bf16.mxu0 0
    %96 = vmatpush1.bf16.msra.mxu0 0
    %97 = vmatprep.subr.bf16.mxu0 0
    %98 = vmatpush1.bf16.msra.mxu0 0
    %99 = vmatprep.subr.bf16.mxu0 0
    %100 = vmatpush1.bf16.msra.mxu0 0
    %101 = vmatprep.subr.bf16.mxu0 0
    %102 = vmatpush1.bf16.msra.mxu0 0
    %103 = vmatprep.subr.bf16.mxu0 0
    %104 = vmatpush1.bf16.msra.mxu0 0
    %105 = vmatprep.mubr.bf16.mxu0 0
    %106 = vmatmul.mubr.bf16.gmra.mrb[0].mxu0 %v71
    %v107 = vpop.f32.mrb[0].mxu0
    %v108 = vadd.f32 %v61, %v107
    %v109 = vpop.f32.mrb[0].mxu0
    %v110 = vpop.f32.mrb[0].mxu0
    %v111 = vadd.f32 %v62, %v110
    %v112 = vpop.f32.mrb[0].mxu0
    %113 = vdwg.mxu0
    %v114 = vld [vmem:[#allocation6 + $0x10] sm:$0xff]
    %v115 = vld [vmem:[#allocation6 + $0x18] sm:$0xff]
    %v116 = vld [vmem:[#allocation4 + $0x8] sm:$0xf]
    %v117 = vld [vmem:[#allocation4 + $0xc] sm:$0xf]
    %v118 = vld [vmem:[#allocation4 + $0x10] sm:$0xf]
    %v119 = vld [vmem:[#allocation4 + $0x14] sm:$0xf]
    %v120 = vpack.c.bf16 %v111, %v108
    %v121 = vld [vmem:[#allocation6 + $0x20] sm:$0x1]
    %v122 = vlaneseq
    %v123 = vshrl.u32 %v122, 7
    %v124 = vsub.s32 0, %v123
    %v125 = vrot.slane %v121, %v124
    %v130 = vunpack.c.l.b16 %v116
    %v131 = vunpack.c.l.b16 %v117
    %v132 = vunpack.c.l.b16 %v118
    %v133 = vunpack.c.l.b16 %v119
    %v134 = vpack.c.b16 %v131, %v130
    %v135 = vpack.c.b16 %v133, %v132
    %vm138 = vcmask 261120
    %v140 = vsel %vm138, %v120, 0
    %142 = vmatprep.subr.bf16.mxu0 0
    %143 = vmatpush1.bf16.msra.mxu0 %v134
    %144 = vmatprep.subr.bf16.mxu0 0
    %145 = vmatpush1.bf16.msra.mxu0 %v135
    %146 = vmatprep.subr.bf16.mxu0 0
    %147 = vmatpush1.bf16.msra.mxu0 0
    %148 = vmatprep.subr.bf16.mxu0 0
    %149 = vmatpush1.bf16.msra.mxu0 0
    %150 = vmatprep.subr.bf16.mxu0 0
    %151 = vmatpush1.bf16.msra.mxu0 0
    %152 = vmatprep.subr.bf16.mxu0 0
    %153 = vmatpush1.bf16.msra.mxu0 0
    %154 = vmatprep.subr.bf16.mxu0 0
    %155 = vmatpush1.bf16.msra.mxu0 0
    %156 = vmatprep.subr.bf16.mxu0 0
    %157 = vmatpush1.bf16.msra.mxu0 0
    %158 = vmatprep.subr.bf16.mxu0 0
    %159 = vmatpush1.bf16.msra.mxu0 0
    %160 = vmatprep.subr.bf16.mxu0 0
    %161 = vmatpush1.bf16.msra.mxu0 0
    %162 = vmatprep.subr.bf16.mxu0 0
    %163 = vmatpush1.bf16.msra.mxu0 0
    %164 = vmatprep.subr.bf16.mxu0 0
    %165 = vmatpush1.bf16.msra.mxu0 0
    %166 = vmatprep.subr.bf16.mxu0 0
    %167 = vmatpush1.bf16.msra.mxu0 0
    %168 = vmatprep.subr.bf16.mxu0 0
    %169 = vmatpush1.bf16.msra.mxu0 0
    %170 = vmatprep.subr.bf16.mxu0 0
    %171 = vmatpush1.bf16.msra.mxu0 0
    %172 = vmatprep.subr.bf16.mxu0 0
    %173 = vmatpush1.bf16.msra.mxu0 0
    %174 = vmatprep.mubr.bf16.mxu0 0
    %175 = vmatmul.mubr.bf16.gmra.mrb[0].mxu0 %v140
    %v176 = vpop.f32.mrb[0].mxu0
    %v177 = vadd.f32 %v125, %v176
    %v178 = vpop.f32.mrb[0].mxu0
    %v179 = vpop.f32.mrb[0].mxu0
    %v180 = vadd.f32 %v125, %v179
    %v181 = vpop.f32.mrb[0].mxu0
    %182 = vdwg.mxu0
    %v183 = vpack.c.bf16 %v180, %v177
    %185 = vrot.lane.b32.xlu0 %v183, 96
    %v186 = vpop.permute.xlu0 %185
    %vm187 = vcmask 64512
    %v189 = vsel %vm187, %v183, 0
    %v192 = vsel %vm187, %v186, 0
    %194 = vmatprep.subr.bf16.mxu0 0
    %195 = vmatpush1.bf16.xpose.msra.mxu0 %v192
    %196 = vmatprep.subr.bf16.mxu0 0
    %197 = vmatpush1.bf16.xpose.msra.mxu0 0
    %198 = vmatprep.subr.bf16.mxu0 0
    %199 = vmatpush1.bf16.xpose.msra.mxu0 0
    %200 = vmatprep.subr.bf16.mxu0 0
    %201 = vmatpush1.bf16.xpose.msra.mxu0 0
    %202 = vmatprep.subr.bf16.mxu0 0
    %203 = vmatpush1.bf16.xpose.msra.mxu0 0
    %204 = vmatprep.subr.bf16.mxu0 0
    %205 = vmatpush1.bf16.xpose.msra.mxu0 0
    %206 = vmatprep.subr.bf16.mxu0 0
    %207 = vmatpush1.bf16.xpose.msra.mxu0 0
    %208 = vmatprep.subr.bf16.mxu0 0
    %209 = vmatpush1.bf16.xpose.msra.mxu0 0
    %210 = vmatprep.subr.bf16.mxu0 0
    %211 = vmatpush1.bf16.xpose.msra.mxu0 0
    %212 = vmatprep.subr.bf16.mxu0 0
    %213 = vmatpush1.bf16.xpose.msra.mxu0 0
    %214 = vmatprep.subr.bf16.mxu0 0
    %215 = vmatpush1.bf16.xpose.msra.mxu0 0
    %216 = vmatprep.subr.bf16.mxu0 0
    %217 = vmatpush1.bf16.xpose.msra.mxu0 0
    %218 = vmatprep.subr.bf16.mxu0 0
    %219 = vmatpush1.bf16.xpose.msra.mxu0 0
    %220 = vmatprep.subr.bf16.mxu0 0
    %221 = vmatpush1.bf16.xpose.msra.mxu0 0
    %222 = vmatprep.subr.bf16.mxu0 0
    %223 = vmatpush1.bf16.xpose.msra.mxu0 0
    %224 = vmatprep.subr.bf16.mxu0 0
    %225 = vmatpush1.bf16.xpose.msra.mxu0 0
    %226 = vmatprep.mubr.bf16.mxu0 0
    %227 = vmatmul.mubr.bf16.gmra.mrb[0].mxu0 %v189
    %v228 = vpop.f32.mrb[0].mxu0
    %v229 = vadd.f32 %v114, %v228
    %v230 = vpop.f32.mrb[0].mxu0
    %v231 = vpop.f32.mrb[0].mxu0
    %v232 = vadd.f32 %v115, %v231
    %v233 = vpop.f32.mrb[0].mxu0
    %234 = vdwg.mxu0
    %v235 = vsel %vm69, %v229, -inf
    %236 = vmax.xlane.f32.xlu0 %v235
    %v237 = vpop.xlane.xlu0 %236
    %v238 = vsel %vm69, %v232, -inf
    %239 = vmax.xlane.f32.xlu0 %v238
    %v240 = vpop.xlane.xlu0 %239
    %v241 = vsub.f32 %v229, %v237
    %v242 = vsub.f32 %v232, %v240
    %v243 = vmul.f32 %v241, 1.442695
    %v244 = vpow.pop %v243
    %v245 = vmul.f32 %v242, 1.442695
    %v246 = vpow.pop %v245
    %v247 = vsel %vm69, %v244, 0.0
    %248 = vadd.xlane.f32.xlu0 %v247
    %v249 = vpop.xlane.xlu0 %248
    %v250 = vsel %vm69, %v246, 0.0
    %251 = vadd.xlane.f32.xlu0 %v250
    %v252 = vpop.xlane.xlu0 %251
    %v253 = vrcp.pop %v249
    %v254 = vmul.f32 %v244, %v253
    %v255 = vrcp.pop %v252
    %v256 = vmul.f32 %v246, %v255
    %v257 = vpack.c.bf16 %v256, %v254
    %258 = vrot.lane.b32.xlu0 %v183, 64
    %v259 = vpop.permute.xlu0 %258
    %v262 = vsel %vm69, %v257, 0
    %264 = vmatprep.subr.bf16.mxu0 0
    %265 = vmatpush1.bf16.msra.mxu0 %v259
    %266 = vmatprep.subr.bf16.mxu0 0
    %267 = vmatpush1.bf16.msra.mxu0 0
    %268 = vmatprep.subr.bf16.mxu0 0
    %269 = vmatpush1.bf16.msra.mxu0 0
    %270 = vmatprep.subr.bf16.mxu0 0
    %271 = vmatpush1.bf16.msra.mxu0 0
    %272 = vmatprep.subr.bf16.mxu0 0
    %273 = vmatpush1.bf16.msra.mxu0 0
    %274 = vmatprep.subr.bf16.mxu0 0
    %275 = vmatpush1.bf16.msra.mxu0 0
    %276 = vmatprep.subr.bf16.mxu0 0
    %277 = vmatpush1.bf16.msra.mxu0 0
    %278 = vmatprep.subr.bf16.mxu0 0
    %279 = vmatpush1.bf16.msra.mxu0 0
    %280 = vmatprep.subr.bf16.mxu0 0
    %281 = vmatpush1.bf16.msra.mxu0 0
    %282 = vmatprep.subr.bf16.mxu0 0
    %283 = vmatpush1.bf16.msra.mxu0 0
    %284 = vmatprep.subr.bf16.mxu0 0
    %285 = vmatpush1.bf16.msra.mxu0 0
    %286 = vmatprep.subr.bf16.mxu0 0
    %287 = vmatpush1.bf16.msra.mxu0 0
    %288 = vmatprep.subr.bf16.mxu0 0
    %289 = vmatpush1.bf16.msra.mxu0 0
    %290 = vmatprep.subr.bf16.mxu0 0
    %291 = vmatpush1.bf16.msra.mxu0 0
    %292 = vmatprep.subr.bf16.mxu0 0
    %293 = vmatpush1.bf16.msra.mxu0 0
    %294 = vmatprep.subr.bf16.mxu0 0
    %295 = vmatpush1.bf16.msra.mxu0 0
    %296 = vmatprep.mubr.bf16.mxu0 0
    %297 = vmatmul.mubr.bf16.gmra.mrb[0].mxu0 %v262
    %v298 = vpop.f32.mrb[0].mxu0
    %v299 = vadd.f32 0.0, %v298
    %v300 = vpop.f32.mrb[0].mxu0
    %v301 = vpop.f32.mrb[0].mxu0
    %v302 = vadd.f32 0.0, %v301
    %v303 = vpop.f32.mrb[0].mxu0
    %304 = vdwg.mxu0
    %305 = vrot.lane.b32.xlu0 %v183, 120
    %v306 = vpop.permute.xlu0 %305
    %307 = vrot.lane.b32.xlu0 %v183, 88
    %v308 = vpop.permute.xlu0 %307
    %v310 = vsel %vm187, %v306, 0
    %v313 = vsel %vm187, %v308, 0
    %315 = vmatprep.subr.bf16.mxu0 0
    %316 = vmatpush1.bf16.xpose.msra.mxu0 %v313
    %317 = vmatprep.subr.bf16.mxu0 0
    %318 = vmatpush1.bf16.xpose.msra.mxu0 0
    %319 = vmatprep.subr.bf16.mxu0 0
    %320 = vmatpush1.bf16.xpose.msra.mxu0 0
    %321 = vmatprep.subr.bf16.mxu0 0
    %322 = vmatpush1.bf16.xpose.msra.mxu0 0
    %323 = vmatprep.subr.bf16.mxu0 0
    %324 = vmatpush1.bf16.xpose.msra.mxu0 0
    %325 = vmatprep.subr.bf16.mxu0 0
    %326 = vmatpush1.bf16.xpose.msra.mxu0 0
    %327 = vmatprep.subr.bf16.mxu0 0
    %328 = vmatpush1.bf16.xpose.msra.mxu0 0
    %329 = vmatprep.subr.bf16.mxu0 0
    %330 = vmatpush1.bf16.xpose.msra.mxu0 0
    %331 = vmatprep.subr.bf16.mxu0 0
    %332 = vmatpush1.bf16.xpose.msra.mxu0 0
    %333 = vmatprep.subr.bf16.mxu0 0
    %334 = vmatpush1.bf16.xpose.msra.mxu0 0
    %335 = vmatprep.subr.bf16.mxu0 0
    %336 = vmatpush1.bf16.xpose.msra.mxu0 0
    %337 = vmatprep.subr.bf16.mxu0 0
    %338 = vmatpush1.bf16.xpose.msra.mxu0 0
    %339 = vmatprep.subr.bf16.mxu0 0
    %340 = vmatpush1.bf16.xpose.msra.mxu0 0
    %341 = vmatprep.subr.bf16.mxu0 0
    %342 = vmatpush1.bf16.xpose.msra.mxu0 0
    %343 = vmatprep.subr.bf16.mxu0 0
    %344 = vmatpush1.bf16.xpose.msra.mxu0 0
    %345 = vmatprep.subr.bf16.mxu0 0
    %346 = vmatpush1.bf16.xpose.msra.mxu0 0
    %347 = vmatprep.mubr.bf16.mxu0 0
    %348 = vmatmul.mubr.bf16.gmra.mrb[0].mxu0 %v310
    %v349 = vpop.f32.mrb[0].mxu0
    %v350 = vadd.f32 %v114, %v349
    %v351 = vpop.f32.mrb[0].mxu0
    %v352 = vpop.f32.mrb[0].mxu0
    %v353 = vadd.f32 %v115, %v352
    %v354 = vpop.f32.mrb[0].mxu0
    %355 = vdwg.mxu0
    %v356 = vsel %vm69, %v350, -inf
    %357 = vmax.xlane.f32.xlu0 %v356
    %v358 = vpop.xlane.xlu0 %357
    %v359 = vsel %vm69, %v353, -inf
    %360 = vmax.xlane.f32.xlu0 %v359
    %v361 = vpop.xlane.xlu0 %360
    %v362 = vsub.f32 %v350, %v358
    %v363 = vsub.f32 %v353, %v361
    %v364 = vmul.f32 %v362, 1.442695
    %v365 = vpow.pop %v364
    %v366 = vmul.f32 %v363, 1.442695
    %v367 = vpow.pop %v366
    %v368 = vsel %vm69, %v365, 0.0
    %369 = vadd.xlane.f32.xlu0 %v368
    %v370 = vpop.xlane.xlu0 %369
    %v371 = vsel %vm69, %v367, 0.0
    %372 = vadd.xlane.f32.xlu0 %v371
    %v373 = vpop.xlane.xlu0 %372
    %v374 = vrcp.pop %v370
    %v375 = vmul.f32 %v365, %v374
    %v376 = vrcp.pop %v373
    %v377 = vmul.f32 %v367, %v376
    %v378 = vpack.c.bf16 %v377, %v375
    %379 = vrot.lane.b32.xlu0 %v183, 56
    %v380 = vpop.permute.xlu0 %379
    %v383 = vsel %vm69, %v378, 0
    %385 = vmatprep.subr.bf16.mxu0 0
    %386 = vmatpush1.bf16.msra.mxu0 %v380
    %387 = vmatprep.subr.bf16.mxu0 0
    %388 = vmatpush1.bf16.msra.mxu0 0
    %389 = vmatprep.subr.bf16.mxu0 0
    %390 = vmatpush1.bf16.msra.mxu0 0
    %391 = vmatprep.subr.bf16.mxu0 0
    %392 = vmatpush1.bf16.msra.mxu0 0
    %393 = vmatprep.subr.bf16.mxu0 0
    %394 = vmatpush1.bf16.msra.mxu0 0
    %395 = vmatprep.subr.bf16.mxu0 0
    %396 = vmatpush1.bf16.msra.mxu0 0
    %397 = vmatprep.subr.bf16.mxu0 0
    %398 = vmatpush1.bf16.msra.mxu0 0
    %399 = vmatprep.subr.bf16.mxu0 0
    %400 = vmatpush1.bf16.msra.mxu0 0
    %401 = vmatprep.subr.bf16.mxu0 0
    %402 = vmatpush1.bf16.msra.mxu0 0
    %403 = vmatprep.subr.bf16.mxu0 0
    %404 = vmatpush1.bf16.msra.mxu0 0
    %405 = vmatprep.subr.bf16.mxu0 0
    %406 = vmatpush1.bf16.msra.mxu0 0
    %407 = vmatprep.subr.bf16.mxu0 0
    %408 = vmatpush1.bf16.msra.mxu0 0
    %409 = vmatprep.subr.bf16.mxu0 0
    %410 = vmatpush1.bf16.msra.mxu0 0
    %411 = vmatprep.subr.bf16.mxu0 0
    %412 = vmatpush1.bf16.msra.mxu0 0
    %413 = vmatprep.subr.bf16.mxu0 0
    %414 = vmatpush1.bf16.msra.mxu0 0
    %415 = vmatprep.subr.bf16.mxu0 0
    %416 = vmatpush1.bf16.msra.mxu0 0
    %417 = vmatprep.mubr.bf16.mxu0 0
    %418 = vmatmul.mubr.bf16.gmra.mrb[0].mxu0 %v383
    %v419 = vpop.f32.mrb[0].mxu0
    %v420 = vadd.f32 0.0, %v419
    %v421 = vpop.f32.mrb[0].mxu0
    %v422 = vpop.f32.mrb[0].mxu0
    %v423 = vadd.f32 0.0, %v422
    %v424 = vpop.f32.mrb[0].mxu0
    %425 = vdwg.mxu0
    %426 = vrot.lane.b32.xlu0 %v183, 112
    %v427 = vpop.permute.xlu0 %426
    %428 = vrot.lane.b32.xlu0 %v183, 80
    %v429 = vpop.permute.xlu0 %428
    %v431 = vsel %vm187, %v427, 0
    %v434 = vsel %vm187, %v429, 0
    %436 = vmatprep.subr.bf16.mxu0 0
    %437 = vmatpush1.bf16.xpose.msra.mxu0 %v434
    %438 = vmatprep.subr.bf16.mxu0 0
    %439 = vmatpush1.bf16.xpose.msra.mxu0 0
    %440 = vmatprep.subr.bf16.mxu0 0
    %441 = vmatpush1.bf16.xpose.msra.mxu0 0
    %442 = vmatprep.subr.bf16.mxu0 0
    %443 = vmatpush1.bf16.xpose.msra.mxu0 0
    %444 = vmatprep.subr.bf16.mxu0 0
    %445 = vmatpush1.bf16.xpose.msra.mxu0 0
    %446 = vmatprep.subr.bf16.mxu0 0
    %447 = vmatpush1.bf16.xpose.msra.mxu0 0
    %448 = vmatprep.subr.bf16.mxu0 0
    %449 = vmatpush1.bf16.xpose.msra.mxu0 0
    %450 = vmatprep.subr.bf16.mxu0 0
    %451 = vmatpush1.bf16.xpose.msra.mxu0 0
    %452 = vmatprep.subr.bf16.mxu0 0
    %453 = vmatpush1.bf16.xpose.msra.mxu0 0
    %454 = vmatprep.subr.bf16.mxu0 0
    %455 = vmatpush1.bf16.xpose.msra.mxu0 0
    %456 = vmatprep.subr.bf16.mxu0 0
    %457 = vmatpush1.bf16.xpose.msra.mxu0 0
    %458 = vmatprep.subr.bf16.mxu0 0
    %459 = vmatpush1.bf16.xpose.msra.mxu0 0
    %460 = vmatprep.subr.bf16.mxu0 0
    %461 = vmatpush1.bf16.xpose.msra.mxu0 0
    %462 = vmatprep.subr.bf16.mxu0 0
    %463 = vmatpush1.bf16.xpose.msra.mxu0 0
    %464 = vmatprep.subr.bf16.mxu0 0
    %465 = vmatpush1.bf16.xpose.msra.mxu0 0
    %466 = vmatprep.subr.bf16.mxu0 0
    %467 = vmatpush1.bf16.xpose.msra.mxu0 0
    %468 = vmatprep.mubr.bf16.mxu0 0
    %469 = vmatmul.mubr.bf16.gmra.mrb[0].mxu0 %v431
    %v470 = vpop.f32.mrb[0].mxu0
    %v471 = vadd.f32 %v114, %v470
    %v472 = vpop.f32.mrb[0].mxu0
    %v473 = vpop.f32.mrb[0].mxu0
    %v474 = vadd.f32 %v115, %v473
    %v475 = vpop.f32.mrb[0].mxu0
    %476 = vdwg.mxu0
    %v477 = vsel %vm69, %v471, -inf
    %478 = vmax.xlane.f32.xlu0 %v477
    %v479 = vpop.xlane.xlu0 %478
    %v480 = vsel %vm69, %v474, -inf
    %481 = vmax.xlane.f32.xlu0 %v480
    %v482 = vpop.xlane.xlu0 %481
    %v483 = vsub.f32 %v471, %v479
    %v484 = vsub.f32 %v474, %v482
    %v485 = vmul.f32 %v483, 1.442695
    %v486 = vpow.pop %v485
    %v487 = vmul.f32 %v484, 1.442695
    %v488 = vpow.pop %v487
    %v489 = vsel %vm69, %v486, 0.0
    %490 = vadd.xlane.f32.xlu0 %v489
    %v491 = vpop.xlane.xlu0 %490
    %v492 = vsel %vm69, %v488, 0.0
    %493 = vadd.xlane.f32.xlu0 %v492
    %v494 = vpop.xlane.xlu0 %493
    %v495 = vrcp.pop %v491
    %v496 = vmul.f32 %v486, %v495
    %v497 = vrcp.pop %v494
    %v498 = vmul.f32 %v488, %v497
    %v499 = vpack.c.bf16 %v498, %v496
    %500 = vrot.lane.b32.xlu0 %v183, 48
    %v501 = vpop.permute.xlu0 %500
    %v504 = vsel %vm69, %v499, 0
    %506 = vmatprep.subr.bf16.mxu0 0
    %507 = vmatpush1.bf16.msra.mxu0 %v501
    %508 = vmatprep.subr.bf16.mxu0 0
    %509 = vmatpush1.bf16.msra.mxu0 0
    %510 = vmatprep.subr.bf16.mxu0 0
    %511 = vmatpush1.bf16.msra.mxu0 0
    %512 = vmatprep.subr.bf16.mxu0 0
    %513 = vmatpush1.bf16.msra.mxu0 0
    %514 = vmatprep.subr.bf16.mxu0 0
    %515 = vmatpush1.bf16.msra.mxu0 0
    %516 = vmatprep.subr.bf16.mxu0 0
    %517 = vmatpush1.bf16.msra.mxu0 0
    %518 = vmatprep.subr.bf16.mxu0 0
    %519 = vmatpush1.bf16.msra.mxu0 0
    %520 = vmatprep.subr.bf16.mxu0 0
    %521 = vmatpush1.bf16.msra.mxu0 0
    %522 = vmatprep.subr.bf16.mxu0 0
    %523 = vmatpush1.bf16.msra.mxu0 0
    %524 = vmatprep.subr.bf16.mxu0 0
    %525 = vmatpush1.bf16.msra.mxu0 0
    %526 = vmatprep.subr.bf16.mxu0 0
    %527 = vmatpush1.bf16.msra.mxu0 0
    %528 = vmatprep.subr.bf16.mxu0 0
    %529 = vmatpush1.bf16.msra.mxu0 0
    %530 = vmatprep.subr.bf16.mxu0 0
    %531 = vmatpush1.bf16.msra.mxu0 0
    %532 = vmatprep.subr.bf16.mxu0 0
    %533 = vmatpush1.bf16.msra.mxu0 0
    %534 = vmatprep.subr.bf16.mxu0 0
    %535 = vmatpush1.bf16.msra.mxu0 0
    %536 = vmatprep.subr.bf16.mxu0 0
    %537 = vmatpush1.bf16.msra.mxu0 0
    %538 = vmatprep.mubr.bf16.mxu0 0
    %539 = vmatmul.mubr.bf16.gmra.mrb[0].mxu0 %v504
    %v540 = vpop.f32.mrb[0].mxu0
    %v541 = vadd.f32 0.0, %v540
    %v542 = vpop.f32.mrb[0].mxu0
    %v543 = vpop.f32.mrb[0].mxu0
    %v544 = vadd.f32 0.0, %v543
    %v545 = vpop.f32.mrb[0].mxu0
    %546 = vdwg.mxu0
    %547 = vrot.lane.b32.xlu0 %v183, 104
    %v548 = vpop.permute.xlu0 %547
    %549 = vrot.lane.b32.xlu0 %v183, 72
    %v550 = vpop.permute.xlu0 %549
    %v552 = vsel %vm187, %v548, 0
    %v555 = vsel %vm187, %v550, 0
    %557 = vmatprep.subr.bf16.mxu0 0
    %558 = vmatpush1.bf16.xpose.msra.mxu0 %v555
    %559 = vmatprep.subr.bf16.mxu0 0
    %560 = vmatpush1.bf16.xpose.msra.mxu0 0
    %561 = vmatprep.subr.bf16.mxu0 0
    %562 = vmatpush1.bf16.xpose.msra.mxu0 0
    %563 = vmatprep.subr.bf16.mxu0 0
    %564 = vmatpush1.bf16.xpose.msra.mxu0 0
    %565 = vmatprep.subr.bf16.mxu0 0
    %566 = vmatpush1.bf16.xpose.msra.mxu0 0
    %567 = vmatprep.subr.bf16.mxu0 0
    %568 = vmatpush1.bf16.xpose.msra.mxu0 0
    %569 = vmatprep.subr.bf16.mxu0 0
    %570 = vmatpush1.bf16.xpose.msra.mxu0 0
    %571 = vmatprep.subr.bf16.mxu0 0
    %572 = vmatpush1.bf16.xpose.msra.mxu0 0
    %573 = vmatprep.subr.bf16.mxu0 0
    %574 = vmatpush1.bf16.xpose.msra.mxu0 0
    %575 = vmatprep.subr.bf16.mxu0 0
    %576 = vmatpush1.bf16.xpose.msra.mxu0 0
    %577 = vmatprep.subr.bf16.mxu0 0
    %578 = vmatpush1.bf16.xpose.msra.mxu0 0
    %579 = vmatprep.subr.bf16.mxu0 0
    %580 = vmatpush1.bf16.xpose.msra.mxu0 0
    %581 = vmatprep.subr.bf16.mxu0 0
    %582 = vmatpush1.bf16.xpose.msra.mxu0 0
    %583 = vmatprep.subr.bf16.mxu0 0
    %584 = vmatpush1.bf16.xpose.msra.mxu0 0
    %585 = vmatprep.subr.bf16.mxu0 0
    %586 = vmatpush1.bf16.xpose.msra.mxu0 0
    %587 = vmatprep.subr.bf16.mxu0 0
    %588 = vmatpush1.bf16.xpose.msra.mxu0 0
    %589 = vmatprep.mubr.bf16.mxu0 0
    %590 = vmatmul.mubr.bf16.gmra.mrb[0].mxu0 %v552
    %v591 = vpop.f32.mrb[0].mxu0
    %v592 = vadd.f32 %v114, %v591
    %v593 = vpop.f32.mrb[0].mxu0
    %v594 = vpop.f32.mrb[0].mxu0
    %v595 = vadd.f32 %v115, %v594
    %v596 = vpop.f32.mrb[0].mxu0
    %597 = vdwg.mxu0
    %v598 = vsel %vm69, %v592, -inf
    %599 = vmax.xlane.f32.xlu0 %v598
    %v600 = vpop.xlane.xlu0 %599
    %v601 = vsel %vm69, %v595, -inf
    %602 = vmax.xlane.f32.xlu0 %v601
    %v603 = vpop.xlane.xlu0 %602
    %v604 = vsub.f32 %v592, %v600
    %v605 = vsub.f32 %v595, %v603
    %v606 = vmul.f32 %v604, 1.442695
    %v607 = vpow.pop %v606
    %v608 = vmul.f32 %v605, 1.442695
    %v609 = vpow.pop %v608
    %v610 = vsel %vm69, %v607, 0.0
    %611 = vadd.xlane.f32.xlu0 %v610
    %v612 = vpop.xlane.xlu0 %611
    %v613 = vsel %vm69, %v609, 0.0
    %614 = vadd.xlane.f32.xlu0 %v613
    %v615 = vpop.xlane.xlu0 %614
    %v616 = vrcp.pop %v612
    %v617 = vmul.f32 %v607, %v616
    %v618 = vrcp.pop %v615
    %v619 = vmul.f32 %v609, %v618
    %v620 = vpack.c.bf16 %v619, %v617
    %621 = vrot.lane.b32.xlu0 %v183, 40
    %v622 = vpop.permute.xlu0 %621
    %v625 = vsel %vm69, %v620, 0
    %627 = vmatprep.subr.bf16.mxu0 0
    %628 = vmatpush1.bf16.msra.mxu0 %v622
    %629 = vmatprep.subr.bf16.mxu0 0
    %630 = vmatpush1.bf16.msra.mxu0 0
    %631 = vmatprep.subr.bf16.mxu0 0
    %632 = vmatpush1.bf16.msra.mxu0 0
    %633 = vmatprep.subr.bf16.mxu0 0
    %634 = vmatpush1.bf16.msra.mxu0 0
    %635 = vmatprep.subr.bf16.mxu0 0
    %636 = vmatpush1.bf16.msra.mxu0 0
    %637 = vmatprep.subr.bf16.mxu0 0
    %638 = vmatpush1.bf16.msra.mxu0 0
    %639 = vmatprep.subr.bf16.mxu0 0
    %640 = vmatpush1.bf16.msra.mxu0 0
    %641 = vmatprep.subr.bf16.mxu0 0
    %642 = vmatpush1.bf16.msra.mxu0 0
    %643 = vmatprep.subr.bf16.mxu0 0
    %644 = vmatpush1.bf16.msra.mxu0 0
    %645 = vmatprep.subr.bf16.mxu0 0
    %646 = vmatpush1.bf16.msra.mxu0 0
    %647 = vmatprep.subr.bf16.mxu0 0
    %648 = vmatpush1.bf16.msra.mxu0 0
    %649 = vmatprep.subr.bf16.mxu0 0
    %650 = vmatpush1.bf16.msra.mxu0 0
    %651 = vmatprep.subr.bf16.mxu0 0
    %652 = vmatpush1.bf16.msra.mxu0 0
    %653 = vmatprep.subr.bf16.mxu0 0
    %654 = vmatpush1.bf16.msra.mxu0 0
    %655 = vmatprep.subr.bf16.mxu0 0
    %656 = vmatpush1.bf16.msra.mxu0 0
    %657 = vmatprep.subr.bf16.mxu0 0
    %658 = vmatpush1.bf16.msra.mxu0 0
    %659 = vmatprep.mubr.bf16.mxu0 0
    %660 = vmatmul.mubr.bf16.gmra.mrb[0].mxu0 %v625
    %v661 = vpop.f32.mrb[0].mxu0
    %v662 = vadd.f32 0.0, %v661
    %v663 = vpop.f32.mrb[0].mxu0
    %v664 = vpop.f32.mrb[0].mxu0
    %v665 = vadd.f32 0.0, %v664
    %v666 = vpop.f32.mrb[0].mxu0
    %667 = vdwg.mxu0
    %670 = vrot.lane.b32.xlu0 %v420, 8
    %v671 = vpop.permute.xlu0 %670
    %672 = vrot.lane.b32.xlu0 %v423, 8
    %v673 = vpop.permute.xlu0 %672
    %678 = vrot.lane.b32.xlu0 %v541, 16
    %v679 = vpop.permute.xlu0 %678
    %680 = vrot.lane.b32.xlu0 %v544, 16
    %v681 = vpop.permute.xlu0 %680
    %686 = vrot.lane.b32.xlu0 %v662, 24
    %v687 = vpop.permute.xlu0 %686
    %688 = vrot.lane.b32.xlu0 %v665, 24
    %v689 = vpop.permute.xlu0 %688
    %v692 = vsel %vm187, %v299, %v671
    %v693 = vsel %vm187, %v302, %v673
    %v694 = vsel %vm69, %v692, %v679
    %v695 = vsel %vm69, %v693, %v681
    %vm696 = vcmask 195584
    %v697 = vsel %vm696, %v694, %v687
    %v698 = vsel %vm696, %v695, %v689
    %v699 = vld [vmem:[#allocation4 + $0x18] sm:$0xf]
    %v700 = vld [vmem:[#allocation4 + $0x1c] sm:$0xf]
    %v701 = vld [vmem:[#allocation4 + $0x20] sm:$0xf]
    %v702 = vld [vmem:[#allocation4 + $0x24] sm:$0xf]
    %v703 = vpack.c.bf16 %v698, %v697
    %v704 = vld [vmem:[#allocation6 + $0x28] sm:$0x1]
    %v705 = vlaneseq
    %v706 = vshrl.u32 %v705, 7
    %v707 = vsub.s32 0, %v706
    %v708 = vrot.slane %v704, %v707
    %v713 = vunpack.c.l.b16 %v699
    %v714 = vunpack.c.l.b16 %v700
    %v715 = vunpack.c.l.b16 %v701
    %v716 = vunpack.c.l.b16 %v702
    %v717 = vpack.c.b16 %v714, %v713
    %v718 = vpack.c.b16 %v716, %v715
    %v722 = vsel %vm138, %v703, 0
    %724 = vmatprep.subr.bf16.mxu0 0
    %725 = vmatpush1.bf16.msra.mxu0 %v717
    %726 = vmatprep.subr.bf16.mxu0 0
    %727 = vmatpush1.bf16.msra.mxu0 %v718
    %728 = vmatprep.subr.bf16.mxu0 0
    %729 = vmatpush1.bf16.msra.mxu0 0
    %730 = vmatprep.subr.bf16.mxu0 0
    %731 = vmatpush1.bf16.msra.mxu0 0
    %732 = vmatprep.subr.bf16.mxu0 0
    %733 = vmatpush1.bf16.msra.mxu0 0
    %734 = vmatprep.subr.bf16.mxu0 0
    %735 = vmatpush1.bf16.msra.mxu0 0
    %736 = vmatprep.subr.bf16.mxu0 0
    %737 = vmatpush1.bf16.msra.mxu0 0
    %738 = vmatprep.subr.bf16.mxu0 0
    %739 = vmatpush1.bf16.msra.mxu0 0
    %740 = vmatprep.subr.bf16.mxu0 0
    %741 = vmatpush1.bf16.msra.mxu0 0
    %742 = vmatprep.subr.bf16.mxu0 0
    %743 = vmatpush1.bf16.msra.mxu0 0
    %744 = vmatprep.subr.bf16.mxu0 0
    %745 = vmatpush1.bf16.msra.mxu0 0
    %746 = vmatprep.subr.bf16.mxu0 0
    %747 = vmatpush1.bf16.msra.mxu0 0
    %748 = vmatprep.subr.bf16.mxu0 0
    %749 = vmatpush1.bf16.msra.mxu0 0
    %750 = vmatprep.subr.bf16.mxu0 0
    %751 = vmatpush1.bf16.msra.mxu0 0
    %752 = vmatprep.subr.bf16.mxu0 0
    %753 = vmatpush1.bf16.msra.mxu0 0
    %754 = vmatprep.subr.bf16.mxu0 0
    %755 = vmatpush1.bf16.msra.mxu0 0
    %756 = vmatprep.mubr.bf16.mxu0 0
    %757 = vmatmul.mubr.bf16.gmra.mrb[0].mxu0 %v722
    %v758 = vpop.f32.mrb[0].mxu0
    %v759 = vadd.f32 %v708, %v758
    %v760 = vpop.f32.mrb[0].mxu0
    %v761 = vpop.f32.mrb[0].mxu0
    %v762 = vadd.f32 %v708, %v761
    %v763 = vpop.f32.mrb[0].mxu0
    %764 = vdwg.mxu0
    %v765 = vadd.f32 %v108, %v759
    %v766 = vadd.f32 %v111, %v762
    %v767 = vld [vmem:[#allocation6 + $0x30] sm:$0x1]
    %v768 = vld [vmem:[#allocation6 + $0x38] sm:$0x1]
    %v769 = vsel %vm138, %v765, 0.0
    %770 = vadd.xlane.f32.xlu0 %v769
    %v771 = vpop.xlane.xlu0 %770
    %v772 = vsel %vm138, %v766, 0.0
    %773 = vadd.xlane.f32.xlu0 %v772
    %v774 = vpop.xlane.xlu0 %773
    %v775 = vrcp.pop 32.0
    %v776 = vmul.f32 %v771, %v775
    %v777 = vmul.f32 %v774, %v775
    %v778 = vsub.f32 %v765, %v776
    %v779 = vsub.f32 %v766, %v777
    %v780 = vmul.f32 %v778, %v778
    %v781 = vmul.f32 %v779, %v779
    %v782 = vsel %vm138, %v780, 0.0
    %783 = vadd.xlane.f32.xlu0 %v782
    %v784 = vpop.xlane.xlu0 %783
    %v785 = vsel %vm138, %v781, 0.0
    %786 = vadd.xlane.f32.xlu0 %v785
    %v787 = vpop.xlane.xlu0 %786
    %v788 = vmul.f32 %v784, %v775
    %v789 = vmul.f32 %v787, %v775
    %v790 = vadd.f32 %v788, 1e-05
    %v791 = vadd.f32 %v789, 1e-05
    %v792 = vrsqrt.pop %v790
    %v793 = vrsqrt.pop %v791
    %v794 = vmul.f32 %v778, %v792
    %v795 = vmul.f32 %v779, %v793
    %v796 = vlaneseq
    %v797 = vshrl.u32 %v796, 7
    %v798 = vsub.s32 0, %v797
    %v799 = vrot.slane %v767, %v798
    %v800 = vmul.f32 %v794, %v799
    %v801 = vmul.f32 %v795, %v799
    %v802 = vlaneseq
    %v803 = vshrl.u32 %v802, 7
    %v804 = vsub.s32 0, %v803
    %v805 = vrot.slane %v768, %v804
    %v806 = vadd.f32 %v800, %v805
    %v807 = vadd.f32 %v801, %v805
    %v808 = vld [vmem:[#allocation4 + $0x28] sm:$0xf]
    %v809 = vld [vmem:[#allocation4 + $0x2c] sm:$0xf]
    %v810 = vld [vmem:[#allocation4 + $0x30] sm:$0xf]
    %v811 = vld [vmem:[#allocation4 + $0x34] sm:$0xf]
    %v812 = vpack.c.bf16 %v807, %v806
    %v813 = vld [vmem:[#allocation6 + $0x40] sm:$0x1]
    %v814 = vlaneseq
    %v815 = vshrl.u32 %v814, 7
    %v816 = vsub.s32 0, %v815
    %v817 = vrot.slane %v813, %v816
    %v822 = vunpack.c.l.b16 %v808
    %v823 = vunpack.c.l.b16 %v809
    %v824 = vunpack.c.l.b16 %v810
    %v825 = vunpack.c.l.b16 %v811
    %v826 = vpack.c.b16 %v823, %v822
    %v827 = vpack.c.b16 %v825, %v824
    %v831 = vsel %vm138, %v812, 0
    %833 = vmatprep.subr.bf16.mxu0 0
    %834 = vmatpush1.bf16.msra.mxu0 %v826
    %835 = vmatprep.subr.bf16.mxu0 0
    %836 = vmatpush1.bf16.msra.mxu0 %v827
    %837 = vmatprep.subr.bf16.mxu0 0
    %838 = vmatpush1.bf16.msra.mxu0 0
    %839 = vmatprep.subr.bf16.mxu0 0
    %840 = vmatpush1.bf16.msra.mxu0 0
    %841 = vmatprep.subr.bf16.mxu0 0
    %842 = vmatpush1.bf16.msra.mxu0 0
    %843 = vmatprep.subr.bf16.mxu0 0
    %844 = vmatpush1.bf16.msra.mxu0 0
    %845 = vmatprep.subr.bf16.mxu0 0
    %846 = vmatpush1.bf16.msra.mxu0 0
    %847 = vmatprep.subr.bf16.mxu0 0
    %848 = vmatpush1.bf16.msra.mxu0 0
    %849 = vmatprep.subr.bf16.mxu0 0
    %850 = vmatpush1.bf16.msra.mxu0 0
    %851 = vmatprep.subr.bf16.mxu0 0
    %852 = vmatpush1.bf16.msra.mxu0 0
    %853 = vmatprep.subr.bf16.mxu0 0
    %854 = vmatpush1.bf16.msra.mxu0 0
    %855 = vmatprep.subr.bf16.mxu0 0
    %856 = vmatpush1.bf16.msra.mxu0 0
    %857 = vmatprep.subr.bf16.mxu0 0
    %858 = vmatpush1.bf16.msra.mxu0 0
    %859 = vmatprep.subr.bf16.mxu0 0
    %860 = vmatpush1.bf16.msra.mxu0 0
    %861 = vmatprep.subr.bf16.mxu0 0
    %862 = vmatpush1.bf16.msra.mxu0 0
    %863 = vmatprep.subr.bf16.mxu0 0
    %864 = vmatpush1.bf16.msra.mxu0 0
    %865 = vmatprep.mubr.bf16.mxu0 0
    %866 = vmatmul.mubr.bf16.gmra.mrb[0].mxu0 %v831
    %v867 = vpop.f32.mrb[0].mxu0
    %v868 = vadd.f32 %v817, %v867
    %v869 = vpop.f32.mrb[0].mxu0
    %v870 = vpop.f32.mrb[0].mxu0
    %v871 = vadd.f32 %v817, %v870
    %v872 = vpop.f32.mrb[0].mxu0
    %873 = vdwg.mxu0
    %v874 = vmax.f32 %v868, 0.0
    %v875 = vmax.f32 %v871, 0.0
    %v876 = vld [vmem:[#allocation4 + $0x38] sm:$0xf]
    %v877 = vld [vmem:[#allocation4 + $0x3c] sm:$0xf]
    %v878 = vld [vmem:[#allocation4 + $0x40] sm:$0xf]
    %v879 = vld [vmem:[#allocation4 + $0x44] sm:$0xf]
    %v880 = vld [vmem:[#allocation4 + $0x48] sm:$0xf]
    %v881 = vld [vmem:[#allocation4 + $0x4c] sm:$0xf]
    %v882 = vld [vmem:[#allocation4 + $0x50] sm:$0xf]
    %v883 = vld [vmem:[#allocation4 + $0x54] sm:$0xf]
    %v884 = vpack.c.bf16 %v875, %v874
    %v885 = vld [vmem:[#allocation6 + $0x48] sm:$0x1]
    %v886 = vlaneseq
    %v887 = vshrl.u32 %v886, 7
    %v888 = vsub.s32 0, %v887
    %v889 = vrot.slane %v885, %v888
    %v898 = vunpack.c.l.b16 %v876
    %v899 = vunpack.c.l.b16 %v877
    %v900 = vunpack.c.l.b16 %v878
    %v901 = vunpack.c.l.b16 %v879
    %v902 = vunpack.c.l.b16 %v880
    %v903 = vunpack.c.l.b16 %v881
    %v904 = vunpack.c.l.b16 %v882
    %v905 = vunpack.c.l.b16 %v883
    %v906 = vpack.c.b16 %v899, %v898
    %v907 = vpack.c.b16 %v901, %v900
    %v908 = vpack.c.b16 %v903, %v902
    %v909 = vpack.c.b16 %v905, %v904
    %vm914 = vcmask 523264
    %v916 = vsel %vm914, %v884, 0
    %918 = vmatprep.subr.bf16.mxu0 0
    %919 = vmatpush1.bf16.msra.mxu0 %v906
    %920 = vmatprep.subr.bf16.mxu0 0
    %921 = vmatpush1.bf16.msra.mxu0 %v907
    %922 = vmatprep.subr.bf16.mxu0 0
    %923 = vmatpush1.bf16.msra.mxu0 %v908
    %924 = vmatprep.subr.bf16.mxu0 0
    %925 = vmatpush1.bf16.msra.mxu0 %v909
    %926 = vmatprep.subr.bf16.mxu0 0
    %927 = vmatpush1.bf16.msra.mxu0 0
    %928 = vmatprep.subr.bf16.mxu0 0
    %929 = vmatpush1.bf16.msra.mxu0 0
    %930 = vmatprep.subr.bf16.mxu0 0
    %931 = vmatpush1.bf16.msra.mxu0 0
    %932 = vmatprep.subr.bf16.mxu0 0
    %933 = vmatpush1.bf16.msra.mxu0 0
    %934 = vmatprep.subr.bf16.mxu0 0
    %935 = vmatpush1.bf16.msra.mxu0 0
    %936 = vmatprep.subr.bf16.mxu0 0
    %937 = vmatpush1.bf16.msra.mxu0 0
    %938 = vmatprep.subr.bf16.mxu0 0
    %939 = vmatpush1.bf16.msra.mxu0 0
    %940 = vmatprep.subr.bf16.mxu0 0
    %941 = vmatpush1.bf16.msra.mxu0 0
    %942 = vmatprep.subr.bf16.mxu0 0
    %943 = vmatpush1.bf16.msra.mxu0 0
    %944 = vmatprep.subr.bf16.mxu0 0
    %945 = vmatpush1.bf16.msra.mxu0 0
    %946 = vmatprep.subr.bf16.mxu0 0
    %947 = vmatpush1.bf16.msra.mxu0 0
    %948 = vmatprep.subr.bf16.mxu0 0
    %949 = vmatpush1.bf16.msra.mxu0 0
    %950 = vmatprep.mubr.bf16.mxu0 0
    %951 = vmatmul.mubr.bf16.gmra.mrb[0].mxu0 %v916
    %v952 = vpop.f32.mrb[0].mxu0
    %v953 = vadd.f32 %v889, %v952
    %v954 = vpop.f32.mrb[0].mxu0
    %v955 = vpop.f32.mrb[0].mxu0
    %v956 = vadd.f32 %v889, %v955
    %v957 = vpop.f32.mrb[0].mxu0
    %958 = vdwg.mxu0
    %v959 = vadd.f32 %v806, %v953
    %v960 = vadd.f32 %v807, %v956
    %v961 = vld [vmem:[#allocation6 + $0x50] sm:$0x1]
    %v962 = vld [vmem:[#allocation6 + $0x58] sm:$0x1]
    %v963 = vsel %vm138, %v959, 0.0
    %964 = vadd.xlane.f32.xlu0 %v963
    %v965 = vpop.xlane.xlu0 %964
    %v966 = vsel %vm138, %v960, 0.0
    %967 = vadd.xlane.f32.xlu0 %v966
    %v968 = vpop.xlane.xlu0 %967
    %v969 = vmul.f32 %v965, %v775
    %v970 = vmul.f32 %v968, %v775
    %v971 = vsub.f32 %v959, %v969
    %v972 = vsub.f32 %v960, %v970
    %v973 = vmul.f32 %v971, %v971
    %v974 = vmul.f32 %v972, %v972
    %v975 = vsel %vm138, %v973, 0.0
    %976 = vadd.xlane.f32.xlu0 %v975
    %v977 = vpop.xlane.xlu0 %976
    %v978 = vsel %vm138, %v974, 0.0
    %979 = vadd.xlane.f32.xlu0 %v978
    %v980 = vpop.xlane.xlu0 %979
    %v981 = vmul.f32 %v977, %v775
    %v982 = vmul.f32 %v980, %v775
    %v983 = vadd.f32 %v981, 1e-05
    %v984 = vadd.f32 %v982, 1e-05
    %v985 = vrsqrt.pop %v983
    %v986 = vrsqrt.pop %v984
    %v987 = vmul.f32 %v971, %v985
    %v988 = vmul.f32 %v972, %v986
    %v989 = vlaneseq
    %v990 = vshrl.u32 %v989, 7
    %v991 = vsub.s32 0, %v990
    %v992 = vrot.slane %v961, %v991
    %v993 = vmul.f32 %v987, %v992
    %v994 = vmul.f32 %v988, %v992
    %v995 = vlaneseq
    %v996 = vshrl.u32 %v995, 7
    %v997 = vsub.s32 0, %v996
    %v998 = vrot.slane %v962, %v997
    %v999 = vadd.f32 %v993, %v998
    %v1000 = vadd.f32 %v994, %v998
    %v1001 = vld [vmem:[#allocation4 + $0x58] sm:$0xf]
    %v1002 = vld [vmem:[#allocation4 + $0x5c] sm:$0xf]
    %v1003 = vld [vmem:[#allocation4 + $0x60] sm:$0xf]
    %v1004 = vld [vmem:[#allocation4 + $0x64] sm:$0xf]
    %v1005 = vpack.c.bf16 %v1000, %v999
    %v1006 = vld [vmem:[#allocation6 + $0x60] sm:$0x1]
    %v1007 = vlaneseq
    %v1008 = vshrl.u32 %v1007, 7
    %v1009 = vsub.s32 0, %v1008
    %v1010 = vrot.slane %v1006, %v1009
    %v1015 = vunpack.c.l.b16 %v1001
    %v1016 = vunpack.c.l.b16 %v1002
    %v1017 = vunpack.c.l.b16 %v1003
    %v1018 = vunpack.c.l.b16 %v1004
    %v1019 = vpack.c.b16 %v1016, %v1015
    %v1020 = vpack.c.b16 %v1018, %v1017
    %v1024 = vsel %vm138, %v1005, 0
    %1026 = vmatprep.subr.bf16.mxu0 0
    %1027 = vmatpush1.bf16.msra.mxu0 %v1019
    %1028 = vmatprep.subr.bf16.mxu0 0
    %1029 = vmatpush1.bf16.msra.mxu0 %v1020
    %1030 = vmatprep.subr.bf16.mxu0 0
    %1031 = vmatpush1.bf16.msra.mxu0 0
    %1032 = vmatprep.subr.bf16.mxu0 0
    %1033 = vmatpush1.bf16.msra.mxu0 0
    %1034 = vmatprep.subr.bf16.mxu0 0
    %1035 = vmatpush1.bf16.msra.mxu0 0
    %1036 = vmatprep.subr.bf16.mxu0 0
    %1037 = vmatpush1.bf16.msra.mxu0 0
    %1038 = vmatprep.subr.bf16.mxu0 0
    %1039 = vmatpush1.bf16.msra.mxu0 0
    %1040 = vmatprep.subr.bf16.mxu0 0
    %1041 = vmatpush1.bf16.msra.mxu0 0
    %1042 = vmatprep.subr.bf16.mxu0 0
    %1043 = vmatpush1.bf16.msra.mxu0 0
    %1044 = vmatprep.subr.bf16.mxu0 0
    %1045 = vmatpush1.bf16.msra.mxu0 0
    %1046 = vmatprep.subr.bf16.mxu0 0
    %1047 = vmatpush1.bf16.msra.mxu0 0
    %1048 = vmatprep.subr.bf16.mxu0 0
    %1049 = vmatpush1.bf16.msra.mxu0 0
    %1050 = vmatprep.subr.bf16.mxu0 0
    %1051 = vmatpush1.bf16.msra.mxu0 0
    %1052 = vmatprep.subr.bf16.mxu0 0
    %1053 = vmatpush1.bf16.msra.mxu0 0
    %1054 = vmatprep.subr.bf16.mxu0 0
    %1055 = vmatpush1.bf16.msra.mxu0 0
    %1056 = vmatprep.subr.bf16.mxu0 0
    %1057 = vmatpush1.bf16.msra.mxu0 0
    %1058 = vmatprep.mubr.bf16.mxu0 0
    %1059 = vmatmul.mubr.bf16.gmra.mrb[0].mxu0 %v1024
    %v1060 = vpop.f32.mrb[0].mxu0
    %v1061 = vadd.f32 %v1010, %v1060
    %v1062 = vpop.f32.mrb[0].mxu0
    %v1063 = vpop.f32.mrb[0].mxu0
    %v1064 = vadd.f32 %v1010, %v1063
    %v1065 = vpop.f32.mrb[0].mxu0
    %1066 = vdwg.mxu0
    %v1067 = vpack.c.bf16 %v1064, %v1061
    %1069 = vrot.lane.b32.xlu0 %v1067, 96
    %v1070 = vpop.permute.xlu0 %1069
    %v1072 = vsel %vm187, %v1067, 0
    %v1075 = vsel %vm187, %v1070, 0
    %1077 = vmatprep.subr.bf16.mxu0 0
    %1078 = vmatpush1.bf16.xpose.msra.mxu0 %v1075
    %1079 = vmatprep.subr.bf16.mxu0 0
    %1080 = vmatpush1.bf16.xpose.msra.mxu0 0
    %1081 = vmatprep.subr.bf16.mxu0 0
    %1082 = vmatpush1.bf16.xpose.msra.mxu0 0
    %1083 = vmatprep.subr.bf16.mxu0 0
    %1084 = vmatpush1.bf16.xpose.msra.mxu0 0
    %1085 = vmatprep.subr.bf16.mxu0 0
    %1086 = vmatpush1.bf16.xpose.msra.mxu0 0
    %1087 = vmatprep.subr.bf16.mxu0 0
    %1088 = vmatpush1.bf16.xpose.msra.mxu0 0
    %1089 = vmatprep.subr.bf16.mxu0 0
    %1090 = vmatpush1.bf16.xpose.msra.mxu0 0
    %1091 = vmatprep.subr.bf16.mxu0 0
    %1092 = vmatpush1.bf16.xpose.msra.mxu0 0
    %1093 = vmatprep.subr.bf16.mxu0 0
    %1094 = vmatpush1.bf16.xpose.msra.mxu0 0
    %1095 = vmatprep.subr.bf16.mxu0 0
    %1096 = vmatpush1.bf16.xpose.msra.mxu0 0
    %1097 = vmatprep.subr.bf16.mxu0 0
    %1098 = vmatpush1.bf16.xpose.msra.mxu0 0
    %1099 = vmatprep.subr.bf16.mxu0 0
    %1100 = vmatpush1.bf16.xpose.msra.mxu0 0
    %1101 = vmatprep.subr.bf16.mxu0 0
    %1102 = vmatpush1.bf16.xpose.msra.mxu0 0
    %1103 = vmatprep.subr.bf16.mxu0 0
    %1104 = vmatpush1.bf16.xpose.msra.mxu0 0
    %1105 = vmatprep.subr.bf16.mxu0 0
    %1106 = vmatpush1.bf16.xpose.msra.mxu0 0
    %1107 = vmatprep.subr.bf16.mxu0 0
    %1108 = vmatpush1.bf16.xpose.msra.mxu0 0
    %1109 = vmatprep.mubr.bf16.mxu0 0
    %1110 = vmatmul.mubr.bf16.gmra.mrb[0].mxu0 %v1072
    %v1111 = vpop.f32.mrb[0].mxu0
    %v1112 = vadd.f32 %v114, %v1111
    %v1113 = vpop.f32.mrb[0].mxu0
    %v1114 = vpop.f32.mrb[0].mxu0
    %v1115 = vadd.f32 %v115, %v1114
    %v1116 = vpop.f32.mrb[0].mxu0
    %1117 = vdwg.mxu0
    %v1118 = vsel %vm69, %v1112, -inf
    %1119 = vmax.xlane.f32.xlu0 %v1118
    %v1120 = vpop.xlane.xlu0 %1119
    %v1121 = vsel %vm69, %v1115, -inf
    %1122 = vmax.xlane.f32.xlu0 %v1121
    %v1123 = vpop.xlane.xlu0 %1122
    %v1124 = vsub.f32 %v1112, %v1120
    %v1125 = vsub.f32 %v1115, %v1123
    %v1126 = vmul.f32 %v1124, 1.442695
    %v1127 = vpow.pop %v1126
    %v1128 = vmul.f32 %v1125, 1.442695
    %v1129 = vpow.pop %v1128
    %v1130 = vsel %vm69, %v1127, 0.0
    %1131 = vadd.xlane.f32.xlu0 %v1130
    %v1132 = vpop.xlane.xlu0 %1131
    %v1133 = vsel %vm69, %v1129, 0.0
    %1134 = vadd.xlane.f32.xlu0 %v1133
    %v1135 = vpop.xlane.xlu0 %1134
    %v1136 = vrcp.pop %v1132
    %v1137 = vmul.f32 %v1127, %v1136
    %v1138 = vrcp.pop %v1135
    %v1139 = vmul.f32 %v1129, %v1138
    %v1140 = vpack.c.bf16 %v1139, %v1137
    %1141 = vrot.lane.b32.xlu0 %v1067, 64
    %v1142 = vpop.permute.xlu0 %1141
    %v1145 = vsel %vm69, %v1140, 0
    %1147 = vmatprep.subr.bf16.mxu0 0
    %1148 = vmatpush1.bf16.msra.mxu0 %v1142
    %1149 = vmatprep.subr.bf16.mxu0 0
    %1150 = vmatpush1.bf16.msra.mxu0 0
    %1151 = vmatprep.subr.bf16.mxu0 0
    %1152 = vmatpush1.bf16.msra.mxu0 0
    %1153 = vmatprep.subr.bf16.mxu0 0
    %1154 = vmatpush1.bf16.msra.mxu0 0
    %1155 = vmatprep.subr.bf16.mxu0 0
    %1156 = vmatpush1.bf16.msra.mxu0 0
    %1157 = vmatprep.subr.bf16.mxu0 0
    %1158 = vmatpush1.bf16.msra.mxu0 0
    %1159 = vmatprep.subr.bf16.mxu0 0
    %1160 = vmatpush1.bf16.msra.mxu0 0
    %1161 = vmatprep.subr.bf16.mxu0 0
    %1162 = vmatpush1.bf16.msra.mxu0 0
    %1163 = vmatprep.subr.bf16.mxu0 0
    %1164 = vmatpush1.bf16.msra.mxu0 0
    %1165 = vmatprep.subr.bf16.mxu0 0
    %1166 = vmatpush1.bf16.msra.mxu0 0
    %1167 = vmatprep.subr.bf16.mxu0 0
    %1168 = vmatpush1.bf16.msra.mxu0 0
    %1169 = vmatprep.subr.bf16.mxu0 0
    %1170 = vmatpush1.bf16.msra.mxu0 0
    %1171 = vmatprep.subr.bf16.mxu0 0
    %1172 = vmatpush1.bf16.msra.mxu0 0
    %1173 = vmatprep.subr.bf16.mxu0 0
    %1174 = vmatpush1.bf16.msra.mxu0 0
    %1175 = vmatprep.subr.bf16.mxu0 0
    %1176 = vmatpush1.bf16.msra.mxu0 0
    %1177 = vmatprep.subr.bf16.mxu0 0
    %1178 = vmatpush1.bf16.msra.mxu0 0
    %1179 = vmatprep.mubr.bf16.mxu0 0
    %1180 = vmatmul.mubr.bf16.gmra.mrb[0].mxu0 %v1145
    %v1181 = vpop.f32.mrb[0].mxu0
    %v1182 = vadd.f32 0.0, %v1181
    %v1183 = vpop.f32.mrb[0].mxu0
    %v1184 = vpop.f32.mrb[0].mxu0
    %v1185 = vadd.f32 0.0, %v1184
    %v1186 = vpop.f32.mrb[0].mxu0
    %1187 = vdwg.mxu0
    %1188 = vrot.lane.b32.xlu0 %v1067, 120
    %v1189 = vpop.permute.xlu0 %1188
    %1190 = vrot.lane.b32.xlu0 %v1067, 88
    %v1191 = vpop.permute.xlu0 %1190
    %v1193 = vsel %vm187, %v1189, 0
    %v1196 = vsel %vm187, %v1191, 0
    %1198 = vmatprep.subr.bf16.mxu0 0
    %1199 = vmatpush1.bf16.xpose.msra.mxu0 %v1196
    %1200 = vmatprep.subr.bf16.mxu0 0
    %1201 = vmatpush1.bf16.xpose.msra.mxu0 0
    %1202 = vmatprep.subr.bf16.mxu0 0
    %1203 = vmatpush1.bf16.xpose.msra.mxu0 0
    %1204 = vmatprep.subr.bf16.mxu0 0
    %1205 = vmatpush1.bf16.xpose.msra.mxu0 0
    %1206 = vmatprep.subr.bf16.mxu0 0
    %1207 = vmatpush1.bf16.xpose.msra.mxu0 0
    %1208 = vmatprep.subr.bf16.mxu0 0
    %1209 = vmatpush1.bf16.xpose.msra.mxu0 0
    %1210 = vmatprep.subr.bf16.mxu0 0
    %1211 = vmatpush1.bf16.xpose.msra.mxu0 0
    %1212 = vmatprep.subr.bf16.mxu0 0
    %1213 = vmatpush1.bf16.xpose.msra.mxu0 0
    %1214 = vmatprep.subr.bf16.mxu0 0
    %1215 = vmatpush1.bf16.xpose.msra.mxu0 0
    %1216 = vmatprep.subr.bf16.mxu0 0
    %1217 = vmatpush1.bf16.xpose.msra.mxu0 0
    %1218 = vmatprep.subr.bf16.mxu0 0
    %1219 = vmatpush1.bf16.xpose.msra.mxu0 0
    %1220 = vmatprep.subr.bf16.mxu0 0
    %1221 = vmatpush1.bf16.xpose.msra.mxu0 0
    %1222 = vmatprep.subr.bf16.mxu0 0
    %1223 = vmatpush1.bf16.xpose.msra.mxu0 0
    %1224 = vmatprep.subr.bf16.mxu0 0
    %1225 = vmatpush1.bf16.xpose.msra.mxu0 0
    %1226 = vmatprep.subr.bf16.mxu0 0
    %1227 = vmatpush1.bf16.xpose.msra.mxu0 0
    %1228 = vmatprep.subr.bf16.mxu0 0
    %1229 = vmatpush1.bf16.xpose.msra.mxu0 0
    %1230 = vmatprep.mubr.bf16.mxu0 0
    %1231 = vmatmul.mubr.bf16.gmra.mrb[0].mxu0 %v1193
    %v1232 = vpop.f32.mrb[0].mxu0
    %v1233 = vadd.f32 %v114, %v1232
    %v1234 = vpop.f32.mrb[0].mxu0
    %v1235 = vpop.f32.mrb[0].mxu0
    %v1236 = vadd.f32 %v115, %v1235
    %v1237 = vpop.f32.mrb[0].mxu0
    %1238 = vdwg.mxu0
    %v1239 = vsel %vm69, %v1233, -inf
    %1240 = vmax.xlane.f32.xlu0 %v1239
    %v1241 = vpop.xlane.xlu0 %1240
    %v1242 = vsel %vm69, %v1236, -inf
    %1243 = vmax.xlane.f32.xlu0 %v1242
    %v1244 = vpop.xlane.xlu0 %1243
    %v1245 = vsub.f32 %v1233, %v1241
    %v1246 = vsub.f32 %v1236, %v1244
    %v1247 = vmul.f32 %v1245, 1.442695
    %v1248 = vpow.pop %v1247
    %v1249 = vmul.f32 %v1246, 1.442695
    %v1250 = vpow.pop %v1249
    %v1251 = vsel %vm69, %v1248, 0.0
    %1252 = vadd.xlane.f32.xlu0 %v1251
    %v1253 = vpop.xlane.xlu0 %1252
    %v1254 = vsel %vm69, %v1250, 0.0
    %1255 = vadd.xlane.f32.xlu0 %v1254
    %v1256 = vpop.xlane.xlu0 %1255
    %v1257 = vrcp.pop %v1253
    %v1258 = vmul.f32 %v1248, %v1257
    %v1259 = vrcp.pop %v1256
    %v1260 = vmul.f32 %v1250, %v1259
    %v1261 = vpack.c.bf16 %v1260, %v1258
    %1262 = vrot.lane.b32.xlu0 %v1067, 56
    %v1263 = vpop.permute.xlu0 %1262
    %v1266 = vsel %vm69, %v1261, 0
    %1268 = vmatprep.subr.bf16.mxu0 0
    %1269 = vmatpush1.bf16.msra.mxu0 %v1263
    %1270 = vmatprep.subr.bf16.mxu0 0
    %1271 = vmatpush1.bf16.msra.mxu0 0
    %1272 = vmatprep.subr.bf16.mxu0 0
    %1273 = vmatpush1.bf16.msra.mxu0 0
    %1274 = vmatprep.subr.bf16.mxu0 0
    %1275 = vmatpush1.bf16.msra.mxu0 0
    %1276 = vmatprep.subr.bf16.mxu0 0
    %1277 = vmatpush1.bf16.msra.mxu0 0
    %1278 = vmatprep.subr.bf16.mxu0 0
    %1279 = vmatpush1.bf16.msra.mxu0 0
    %1280 = vmatprep.subr.bf16.mxu0 0
    %1281 = vmatpush1.bf16.msra.mxu0 0
    %1282 = vmatprep.subr.bf16.mxu0 0
    %1283 = vmatpush1.bf16.msra.mxu0 0
    %1284 = vmatprep.subr.bf16.mxu0 0
    %1285 = vmatpush1.bf16.msra.mxu0 0
    %1286 = vmatprep.subr.bf16.mxu0 0
    %1287 = vmatpush1.bf16.msra.mxu0 0
    %1288 = vmatprep.subr.bf16.mxu0 0
    %1289 = vmatpush1.bf16.msra.mxu0 0
    %1290 = vmatprep.subr.bf16.mxu0 0
    %1291 = vmatpush1.bf16.msra.mxu0 0
    %1292 = vmatprep.subr.bf16.mxu0 0
    %1293 = vmatpush1.bf16.msra.mxu0 0
    %1294 = vmatprep.subr.bf16.mxu0 0
    %1295 = vmatpush1.bf16.msra.mxu0 0
    %1296 = vmatprep.subr.bf16.mxu0 0
    %1297 = vmatpush1.bf16.msra.mxu0 0
    %1298 = vmatprep.subr.bf16.mxu0 0
    %1299 = vmatpush1.bf16.msra.mxu0 0
    %1300 = vmatprep.mubr.bf16.mxu0 0
    %1301 = vmatmul.mubr.bf16.gmra.mrb[0].mxu0 %v1266
    %v1302 = vpop.f32.mrb[0].mxu0
    %v1303 = vadd.f32 0.0, %v1302
    %v1304 = vpop.f32.mrb[0].mxu0
    %v1305 = vpop.f32.mrb[0].mxu0
    %v1306 = vadd.f32 0.0, %v1305
    %v1307 = vpop.f32.mrb[0].mxu0
    %1308 = vdwg.mxu0
    %1309 = vrot.lane.b32.xlu0 %v1067, 112
    %v1310 = vpop.permute.xlu0 %1309
    %1311 = vrot.lane.b32.xlu0 %v1067, 80
    %v1312 = vpop.permute.xlu0 %1311
    %v1314 = vsel %vm187, %v1310, 0
    %v1317 = vsel %vm187, %v1312, 0
    %1319 = vmatprep.subr.bf16.mxu0 0
    %1320 = vmatpush1.bf16.xpose.msra.mxu0 %v1317
    %1321 = vmatprep.subr.bf16.mxu0 0
    %1322 = vmatpush1.bf16.xpose.msra.mxu0 0
    %1323 = vmatprep.subr.bf16.mxu0 0
    %1324 = vmatpush1.bf16.xpose.msra.mxu0 0
    %1325 = vmatprep.subr.bf16.mxu0 0
    %1326 = vmatpush1.bf16.xpose.msra.mxu0 0
    %1327 = vmatprep.subr.bf16.mxu0 0
    %1328 = vmatpush1.bf16.xpose.msra.mxu0 0
    %1329 = vmatprep.subr.bf16.mxu0 0
    %1330 = vmatpush1.bf16.xpose.msra.mxu0 0
    %1331 = vmatprep.subr.bf16.mxu0 0
    %1332 = vmatpush1.bf16.xpose.msra.mxu0 0
    %1333 = vmatprep.subr.bf16.mxu0 0
    %1334 = vmatpush1.bf16.xpose.msra.mxu0 0
    %1335 = vmatprep.subr.bf16.mxu0 0
    %1336 = vmatpush1.bf16.xpose.msra.mxu0 0
    %1337 = vmatprep.subr.bf16.mxu0 0
    %1338 = vmatpush1.bf16.xpose.msra.mxu0 0
    %1339 = vmatprep.subr.bf16.mxu0 0
    %1340 = vmatpush1.bf16.xpose.msra.mxu0 0
    %1341 = vmatprep.subr.bf16.mxu0 0
    %1342 = vmatpush1.bf16.xpose.msra.mxu0 0
    %1343 = vmatprep.subr.bf16.mxu0 0
    %1344 = vmatpush1.bf16.xpose.msra.mxu0 0
    %1345 = vmatprep.subr.bf16.mxu0 0
    %1346 = vmatpush1.bf16.xpose.msra.mxu0 0
    %1347 = vmatprep.subr.bf16.mxu0 0
    %1348 = vmatpush1.bf16.xpose.msra.mxu0 0
    %1349 = vmatprep.subr.bf16.mxu0 0
    %1350 = vmatpush1.bf16.xpose.msra.mxu0 0
    %1351 = vmatprep.mubr.bf16.mxu0 0
    %1352 = vmatmul.mubr.bf16.gmra.mrb[0].mxu0 %v1314
    %v1353 = vpop.f32.mrb[0].mxu0
    %v1354 = vadd.f32 %v114, %v1353
    %v1355 = vpop.f32.mrb[0].mxu0
    %v1356 = vpop.f32.mrb[0].mxu0
    %v1357 = vadd.f32 %v115, %v1356
    %v1358 = vpop.f32.mrb[0].mxu0
    %1359 = vdwg.mxu0
    %v1360 = vsel %vm69, %v1354, -inf
    %1361 = vmax.xlane.f32.xlu0 %v1360
    %v1362 = vpop.xlane.xlu0 %1361
    %v1363 = vsel %vm69, %v1357, -inf
    %1364 = vmax.xlane.f32.xlu0 %v1363
    %v1365 = vpop.xlane.xlu0 %1364
    %v1366 = vsub.f32 %v1354, %v1362
    %v1367 = vsub.f32 %v1357, %v1365
    %v1368 = vmul.f32 %v1366, 1.442695
    %v1369 = vpow.pop %v1368
    %v1370 = vmul.f32 %v1367, 1.442695
    %v1371 = vpow.pop %v1370
    %v1372 = vsel %vm69, %v1369, 0.0
    %1373 = vadd.xlane.f32.xlu0 %v1372
    %v1374 = vpop.xlane.xlu0 %1373
    %v1375 = vsel %vm69, %v1371, 0.0
    %1376 = vadd.xlane.f32.xlu0 %v1375
    %v1377 = vpop.xlane.xlu0 %1376
    %v1378 = vrcp.pop %v1374
    %v1379 = vmul.f32 %v1369, %v1378
    %v1380 = vrcp.pop %v1377
    %v1381 = vmul.f32 %v1371, %v1380
    %v1382 = vpack.c.bf16 %v1381, %v1379
    %1383 = vrot.lane.b32.xlu0 %v1067, 48
    %v1384 = vpop.permute.xlu0 %1383
    %v1387 = vsel %vm69, %v1382, 0
    %1389 = vmatprep.subr.bf16.mxu0 0
    %1390 = vmatpush1.bf16.msra.mxu0 %v1384
    %1391 = vmatprep.subr.bf16.mxu0 0
    %1392 = vmatpush1.bf16.msra.mxu0 0
    %1393 = vmatprep.subr.bf16.mxu0 0
    %1394 = vmatpush1.bf16.msra.mxu0 0
    %1395 = vmatprep.subr.bf16.mxu0 0
    %1396 = vmatpush1.bf16.msra.mxu0 0
    %1397 = vmatprep.subr.bf16.mxu0 0
    %1398 = vmatpush1.bf16.msra.mxu0 0
    %1399 = vmatprep.subr.bf16.mxu0 0
    %1400 = vmatpush1.bf16.msra.mxu0 0
    %1401 = vmatprep.subr.bf16.mxu0 0
    %1402 = vmatpush1.bf16.msra.mxu0 0
    %1403 = vmatprep.subr.bf16.mxu0 0
    %1404 = vmatpush1.bf16.msra.mxu0 0
    %1405 = vmatprep.subr.bf16.mxu0 0
    %1406 = vmatpush1.bf16.msra.mxu0 0
    %1407 = vmatprep.subr.bf16.mxu0 0
    %1408 = vmatpush1.bf16.msra.mxu0 0
    %1409 = vmatprep.subr.bf16.mxu0 0
    %1410 = vmatpush1.bf16.msra.mxu0 0
    %1411 = vmatprep.subr.bf16.mxu0 0
    %1412 = vmatpush1.bf16.msra.mxu0 0
    %1413 = vmatprep.subr.bf16.mxu0 0
    %1414 = vmatpush1.bf16.msra.mxu0 0
    %1415 = vmatprep.subr.bf16.mxu0 0
    %1416 = vmatpush1.bf16.msra.mxu0 0
    %1417 = vmatprep.subr.bf16.mxu0 0
    %1418 = vmatpush1.bf16.msra.mxu0 0
    %1419 = vmatprep.subr.bf16.mxu0 0
    %1420 = vmatpush1.bf16.msra.mxu0 0
    %1421 = vmatprep.mubr.bf16.mxu0 0
    %1422 = vmatmul.mubr.bf16.gmra.mrb[0].mxu0 %v1387
    %v1423 = vpop.f32.mrb[0].mxu0
    %v1424 = vadd.f32 0.0, %v1423
    %v1425 = vpop.f32.mrb[0].mxu0
    %v1426 = vpop.f32.mrb[0].mxu0
    %v1427 = vadd.f32 0.0, %v1426
    %v1428 = vpop.f32.mrb[0].mxu0
    %1429 = vdwg.mxu0
    %1430 = vrot.lane.b32.xlu0 %v1067, 104
    %v1431 = vpop.permute.xlu0 %1430
    %1432 = vrot.lane.b32.xlu0 %v1067, 72
    %v1433 = vpop.permute.xlu0 %1432
    %v1435 = vsel %vm187, %v1431, 0
    %v1438 = vsel %vm187, %v1433, 0
    %1440 = vmatprep.subr.bf16.mxu0 0
    %1441 = vmatpush1.bf16.xpose.msra.mxu0 %v1438
    %1442 = vmatprep.subr.bf16.mxu0 0
    %1443 = vmatpush1.bf16.xpose.msra.mxu0 0
    %1444 = vmatprep.subr.bf16.mxu0 0
    %1445 = vmatpush1.bf16.xpose.msra.mxu0 0
    %1446 = vmatprep.subr.bf16.mxu0 0
    %1447 = vmatpush1.bf16.xpose.msra.mxu0 0
    %1448 = vmatprep.subr.bf16.mxu0 0
    %1449 = vmatpush1.bf16.xpose.msra.mxu0 0
    %1450 = vmatprep.subr.bf16.mxu0 0
    %1451 = vmatpush1.bf16.xpose.msra.mxu0 0
    %1452 = vmatprep.subr.bf16.mxu0 0
    %1453 = vmatpush1.bf16.xpose.msra.mxu0 0
    %1454 = vmatprep.subr.bf16.mxu0 0
    %1455 = vmatpush1.bf16.xpose.msra.mxu0 0
    %1456 = vmatprep.subr.bf16.mxu0 0
    %1457 = vmatpush1.bf16.xpose.msra.mxu0 0
    %1458 = vmatprep.subr.bf16.mxu0 0
    %1459 = vmatpush1.bf16.xpose.msra.mxu0 0
    %1460 = vmatprep.subr.bf16.mxu0 0
    %1461 = vmatpush1.bf16.xpose.msra.mxu0 0
    %1462 = vmatprep.subr.bf16.mxu0 0
    %1463 = vmatpush1.bf16.xpose.msra.mxu0 0
    %1464 = vmatprep.subr.bf16.mxu0 0
    %1465 = vmatpush1.bf16.xpose.msra.mxu0 0
    %1466 = vmatprep.subr.bf16.mxu0 0
    %1467 = vmatpush1.bf16.xpose.msra.mxu0 0
    %1468 = vmatprep.subr.bf16.mxu0 0
    %1469 = vmatpush1.bf16.xpose.msra.mxu0 0
    %1470 = vmatprep.subr.bf16.mxu0 0
    %1471 = vmatpush1.bf16.xpose.msra.mxu0 0
    %1472 = vmatprep.mubr.bf16.mxu0 0
    %1473 = vmatmul.mubr.bf16.gmra.mrb[0].mxu0 %v1435
    %v1474 = vpop.f32.mrb[0].mxu0
    %v1475 = vadd.f32 %v114, %v1474
    %v1476 = vpop.f32.mrb[0].mxu0
    %v1477 = vpop.f32.mrb[0].mxu0
    %v1478 = vadd.f32 %v115, %v1477
    %v1479 = vpop.f32.mrb[0].mxu0
    %1480 = vdwg.mxu0
    %v1481 = vsel %vm69, %v1475, -inf
    %1482 = vmax.xlane.f32.xlu0 %v1481
    %v1483 = vpop.xlane.xlu0 %1482
    %v1484 = vsel %vm69, %v1478, -inf
    %1485 = vmax.xlane.f32.xlu0 %v1484
    %v1486 = vpop.xlane.xlu0 %1485
    %v1487 = vsub.f32 %v1475, %v1483
    %v1488 = vsub.f32 %v1478, %v1486
    %v1489 = vmul.f32 %v1487, 1.442695
    %v1490 = vpow.pop %v1489
    %v1491 = vmul.f32 %v1488, 1.442695
    %v1492 = vpow.pop %v1491
    %v1493 = vsel %vm69, %v1490, 0.0
    %1494 = vadd.xlane.f32.xlu0 %v1493
    %v1495 = vpop.xlane.xlu0 %1494
    %v1496 = vsel %vm69, %v1492, 0.0
    %1497 = vadd.xlane.f32.xlu0 %v1496
    %v1498 = vpop.xlane.xlu0 %1497
    %v1499 = vrcp.pop %v1495
    %v1500 = vmul.f32 %v1490, %v1499
    %v1501 = vrcp.pop %v1498
    %v1502 = vmul.f32 %v1492, %v1501
    %v1503 = vpack.c.bf16 %v1502, %v1500
    %1504 = vrot.lane.b32.xlu0 %v1067, 40
    %v1505 = vpop.permute.xlu0 %1504
    %v1508 = vsel %vm69, %v1503, 0
    %1510 = vmatprep.subr.bf16.mxu0 0
    %1511 = vmatpush1.bf16.msra.mxu0 %v1505
    %1512 = vmatprep.subr.bf16.mxu0 0
    %1513 = vmatpush1.bf16.msra.mxu0 0
    %1514 = vmatprep.subr.bf16.mxu0 0
    %1515 = vmatpush1.bf16.msra.mxu0 0
    %1516 = vmatprep.subr.bf16.mxu0 0
    %1517 = vmatpush1.bf16.msra.mxu0 0
    %1518 = vmatprep.subr.bf16.mxu0 0
    %1519 = vmatpush1.bf16.msra.mxu0 0
    %1520 = vmatprep.subr.bf16.mxu0 0
    %1521 = vmatpush1.bf16.msra.mxu0 0
    %1522 = vmatprep.subr.bf16.mxu0 0
    %1523 = vmatpush1.bf16.msra.mxu0 0
    %1524 = vmatprep.subr.bf16.mxu0 0
    %1525 = vmatpush1.bf16.msra.mxu0 0
    %1526 = vmatprep.subr.bf16.mxu0 0
    %1527 = vmatpush1.bf16.msra.mxu0 0
    %1528 = vmatprep.subr.bf16.mxu0 0
    %1529 = vmatpush1.bf16.msra.mxu0 0
    %1530 = vmatprep.subr.bf16.mxu0 0
    %1531 = vmatpush1.bf16.msra.mxu0 0
    %1532 = vmatprep.subr.bf16.mxu0 0
    %1533 = vmatpush1.bf16.msra.mxu0 0
    %1534 = vmatprep.subr.bf16.mxu0 0
    %1535 = vmatpush1.bf16.msra.mxu0 0
    %1536 = vmatprep.subr.bf16.mxu0 0
    %1537 = vmatpush1.bf16.msra.mxu0 0
    %1538 = vmatprep.subr.bf16.mxu0 0
    %1539 = vmatpush1.bf16.msra.mxu0 0
    %1540 = vmatprep.subr.bf16.mxu0 0
    %1541 = vmatpush1.bf16.msra.mxu0 0
    %1542 = vmatprep.mubr.bf16.mxu0 0
    %1543 = vmatmul.mubr.bf16.gmra.mrb[0].mxu0 %v1508
    %v1544 = vpop.f32.mrb[0].mxu0
    %v1545 = vadd.f32 0.0, %v1544
    %v1546 = vpop.f32.mrb[0].mxu0
    %v1547 = vpop.f32.mrb[0].mxu0
    %v1548 = vadd.f32 0.0, %v1547
    %v1549 = vpop.f32.mrb[0].mxu0
    %1550 = vdwg.mxu0
    %1553 = vrot.lane.b32.xlu0 %v1303, 8
    %v1554 = vpop.permute.xlu0 %1553
    %1555 = vrot.lane.b32.xlu0 %v1306, 8
    %v1556 = vpop.permute.xlu0 %1555
    %1561 = vrot.lane.b32.xlu0 %v1424, 16
    %v1562 = vpop.permute.xlu0 %1561
    %1563 = vrot.lane.b32.xlu0 %v1427, 16
    %v1564 = vpop.permute.xlu0 %1563
    %1569 = vrot.lane.b32.xlu0 %v1545, 24
    %v1570 = vpop.permute.xlu0 %1569
    %1571 = vrot.lane.b32.xlu0 %v1548, 24
    %v1572 = vpop.permute.xlu0 %1571
    %v1575 = vsel %vm187, %v1182, %v1554
    %v1576 = vsel %vm187, %v1185, %v1556
    %v1577 = vsel %vm69, %v1575, %v1562
    %v1578 = vsel %vm69, %v1576, %v1564
    %v1579 = vsel %vm696, %v1577, %v1570
    %v1580 = vsel %vm696, %v1578, %v1572
    %v1581 = vld [vmem:[#allocation4 + $0x68] sm:$0xf]
    %v1582 = vld [vmem:[#allocation4 + $0x6c] sm:$0xf]
    %v1583 = vld [vmem:[#allocation4 + $0x70] sm:$0xf]
    %v1584 = vld [vmem:[#allocation4 + $0x74] sm:$0xf]
    %v1585 = vpack.c.bf16 %v1580, %v1579
    %v1586 = vld [vmem:[#allocation6 + $0x68] sm:$0x1]
    %v1587 = vlaneseq
    %v1588 = vshrl.u32 %v1587, 7
    %v1589 = vsub.s32 0, %v1588
    %v1590 = vrot.slane %v1586, %v1589
    %v1595 = vunpack.c.l.b16 %v1581
    %v1596 = vunpack.c.l.b16 %v1582
    %v1597 = vunpack.c.l.b16 %v1583
    %v1598 = vunpack.c.l.b16 %v1584
    %v1599 = vpack.c.b16 %v1596, %v1595
    %v1600 = vpack.c.b16 %v1598, %v1597
    %v1604 = vsel %vm138, %v1585, 0
    %1606 = vmatprep.subr.bf16.mxu0 0
    %1607 = vmatpush1.bf16.msra.mxu0 %v1599
    %1608 = vmatprep.subr.bf16.mxu0 0
    %1609 = vmatpush1.bf16.msra.mxu0 %v1600
    %1610 = vmatprep.subr.bf16.mxu0 0
    %1611 = vmatpush1.bf16.msra.mxu0 0
    %1612 = vmatprep.subr.bf16.mxu0 0
    %1613 = vmatpush1.bf16.msra.mxu0 0
    %1614 = vmatprep.subr.bf16.mxu0 0
    %1615 = vmatpush1.bf16.msra.mxu0 0
    %1616 = vmatprep.subr.bf16.mxu0 0
    %1617 = vmatpush1.bf16.msra.mxu0 0
    %1618 = vmatprep.subr.bf16.mxu0 0
    %1619 = vmatpush1.bf16.msra.mxu0 0
    %1620 = vmatprep.subr.bf16.mxu0 0
    %1621 = vmatpush1.bf16.msra.mxu0 0
    %1622 = vmatprep.subr.bf16.mxu0 0
    %1623 = vmatpush1.bf16.msra.mxu0 0
    %1624 = vmatprep.subr.bf16.mxu0 0
    %1625 = vmatpush1.bf16.msra.mxu0 0
    %1626 = vmatprep.subr.bf16.mxu0 0
    %1627 = vmatpush1.bf16.msra.mxu0 0
    %1628 = vmatprep.subr.bf16.mxu0 0
    %1629 = vmatpush1.bf16.msra.mxu0 0
    %1630 = vmatprep.subr.bf16.mxu0 0
    %1631 = vmatpush1.bf16.msra.mxu0 0
    %1632 = vmatprep.subr.bf16.mxu0 0
    %1633 = vmatpush1.bf16.msra.mxu0 0
    %1634 = vmatprep.subr.bf16.mxu0 0
    %1635 = vmatpush1.bf16.msra.mxu0 0
    %1636 = vmatprep.subr.bf16.mxu0 0
    %1637 = vmatpush1.bf16.msra.mxu0 0
    %1638 = vmatprep.mubr.bf16.mxu0 0
    %1639 = vmatmul.mubr.bf16.gmra.mrb[0].mxu0 %v1604
    %v1640 = vpop.f32.mrb[0].mxu0
    %v1641 = vadd.f32 %v1590, %v1640
    %v1642 = vpop.f32.mrb[0].mxu0
    %v1643 = vpop.f32.mrb[0].mxu0
    %v1644 = vadd.f32 %v1590, %v1643
    %v1645 = vpop.f32.mrb[0].mxu0
    %1646 = vdwg.mxu0
    %v1647 = vadd.f32 %v999, %v1641
    %v1648 = vadd.f32 %v1000, %v1644
    %v1649 = vld [vmem:[#allocation6 + $0x70] sm:$0x1]
    %v1650 = vld [vmem:[#allocation6 + $0x78] sm:$0x1]
    %v1651 = vsel %vm138, %v1647, 0.0
    %1652 = vadd.xlane.f32.xlu0 %v1651
    %v1653 = vpop.xlane.xlu0 %1652
    %v1654 = vsel %vm138, %v1648, 0.0
    %1655 = vadd.xlane.f32.xlu0 %v1654
    %v1656 = vpop.xlane.xlu0 %1655
    %v1657 = vmul.f32 %v1653, %v775
    %v1658 = vmul.f32 %v1656, %v775
    %v1659 = vsub.f32 %v1647, %v1657
    %v1660 = vsub.f32 %v1648, %v1658
    %v1661 = vmul.f32 %v1659, %v1659
    %v1662 = vmul.f32 %v1660, %v1660
    %v1663 = vsel %vm138, %v1661, 0.0
    %1664 = vadd.xlane.f32.xlu0 %v1663
    %v1665 = vpop.xlane.xlu0 %1664
    %v1666 = vsel %vm138, %v1662, 0.0
    %1667 = vadd.xlane.f32.xlu0 %v1666
    %v1668 = vpop.xlane.xlu0 %1667
    %v1669 = vmul.f32 %v1665, %v775
    %v1670 = vmul.f32 %v1668, %v775
    %v1671 = vadd.f32 %v1669, 1e-05
    %v1672 = vadd.f32 %v1670, 1e-05
    %v1673 = vrsqrt.pop %v1671
    %v1674 = vrsqrt.pop %v1672
    %v1675 = vmul.f32 %v1659, %v1673
    %v1676 = vmul.f32 %v1660, %v1674
    %v1677 = vlaneseq
    %v1678 = vshrl.u32 %v1677, 7
    %v1679 = vsub.s32 0, %v1678
    %v1680 = vrot.slane %v1649, %v1679
    %v1681 = vmul.f32 %v1675, %v1680
    %v1682 = vmul.f32 %v1676, %v1680
    %v1683 = vlaneseq
    %v1684 = vshrl.u32 %v1683, 7
    %v1685 = vsub.s32 0, %v1684
    %v1686 = vrot.slane %v1650, %v1685
    %v1687 = vadd.f32 %v1681, %v1686
    %v1688 = vadd.f32 %v1682, %v1686
    %v1689 = vld [vmem:[#allocation4 + $0x78] sm:$0xf]
    %v1690 = vld [vmem:[#allocation4 + $0x7c] sm:$0xf]
    %v1691 = vld [vmem:[#allocation4 + $0x80] sm:$0xf]
    %v1692 = vld [vmem:[#allocation4 + $0x84] sm:$0xf]
    %v1693 = vpack.c.bf16 %v1688, %v1687
    %v1694 = vld [vmem:[#allocation6 + $0x80] sm:$0x1]
    %v1695 = vlaneseq
    %v1696 = vshrl.u32 %v1695, 7
    %v1697 = vsub.s32 0, %v1696
    %v1698 = vrot.slane %v1694, %v1697
    %v1703 = vunpack.c.l.b16 %v1689
    %v1704 = vunpack.c.l.b16 %v1690
    %v1705 = vunpack.c.l.b16 %v1691
    %v1706 = vunpack.c.l.b16 %v1692
    %v1707 = vpack.c.b16 %v1704, %v1703
    %v1708 = vpack.c.b16 %v1706, %v1705
    %v1712 = vsel %vm138, %v1693, 0
    %1714 = vmatprep.subr.bf16.mxu0 0
    %1715 = vmatpush1.bf16.msra.mxu0 %v1707
    %1716 = vmatprep.subr.bf16.mxu0 0
    %1717 = vmatpush1.bf16.msra.mxu0 %v1708
    %1718 = vmatprep.subr.bf16.mxu0 0
    %1719 = vmatpush1.bf16.msra.mxu0 0
    %1720 = vmatprep.subr.bf16.mxu0 0
    %1721 = vmatpush1.bf16.msra.mxu0 0
    %1722 = vmatprep.subr.bf16.mxu0 0
    %1723 = vmatpush1.bf16.msra.mxu0 0
    %1724 = vmatprep.subr.bf16.mxu0 0
    %1725 = vmatpush1.bf16.msra.mxu0 0
    %1726 = vmatprep.subr.bf16.mxu0 0
    %1727 = vmatpush1.bf16.msra.mxu0 0
    %1728 = vmatprep.subr.bf16.mxu0 0
    %1729 = vmatpush1.bf16.msra.mxu0 0
    %1730 = vmatprep.subr.bf16.mxu0 0
    %1731 = vmatpush1.bf16.msra.mxu0 0
    %1732 = vmatprep.subr.bf16.mxu0 0
    %1733 = vmatpush1.bf16.msra.mxu0 0
    %1734 = vmatprep.subr.bf16.mxu0 0
    %1735 = vmatpush1.bf16.msra.mxu0 0
    %1736 = vmatprep.subr.bf16.mxu0 0
    %1737 = vmatpush1.bf16.msra.mxu0 0
    %1738 = vmatprep.subr.bf16.mxu0 0
    %1739 = vmatpush1.bf16.msra.mxu0 0
    %1740 = vmatprep.subr.bf16.mxu0 0
    %1741 = vmatpush1.bf16.msra.mxu0 0
    %1742 = vmatprep.subr.bf16.mxu0 0
    %1743 = vmatpush1.bf16.msra.mxu0 0
    %1744 = vmatprep.subr.bf16.mxu0 0
    %1745 = vmatpush1.bf16.msra.mxu0 0
    %1746 = vmatprep.mubr.bf16.mxu0 0
    %1747 = vmatmul.mubr.bf16.gmra.mrb[0].mxu0 %v1712
    %v1748 = vpop.f32.mrb[0].mxu0
    %v1749 = vadd.f32 %v1698, %v1748
    %v1750 = vpop.f32.mrb[0].mxu0
    %v1751 = vpop.f32.mrb[0].mxu0
    %v1752 = vadd.f32 %v1698, %v1751
    %v1753 = vpop.f32.mrb[0].mxu0
    %1754 = vdwg.mxu0
    %v1755 = vmax.f32 %v1749, 0.0
    %v1756 = vmax.f32 %v1752, 0.0
    %v1757 = vld [vmem:[#allocation4 + $0x88] sm:$0xf]
    %v1758 = vld [vmem:[#allocation4 + $0x8c] sm:$0xf]
    %v1759 = vld [vmem:[#allocation4 + $0x90] sm:$0xf]
    %v1760 = vld [vmem:[#allocation4 + $0x94] sm:$0xf]
    %v1761 = vld [vmem:[#allocation4 + $0x98] sm:$0xf]
    %v1762 = vld [vmem:[#allocation4 + $0x9c] sm:$0xf]
    %v1763 = vld [vmem:[#allocation4 + $0xa0] sm:$0xf]
    %v1764 = vld [vmem:[#allocation4 + $0xa4] sm:$0xf]
    %v1765 = vpack.c.bf16 %v1756, %v1755
    %v1766 = vld [vmem:[#allocation6 + $0x88] sm:$0x1]
    %v1767 = vlaneseq
    %v1768 = vshrl.u32 %v1767, 7
    %v1769 = vsub.s32 0, %v1768
    %v1770 = vrot.slane %v1766, %v1769
    %v1779 = vunpack.c.l.b16 %v1757
    %v1780 = vunpack.c.l.b16 %v1758
    %v1781 = vunpack.c.l.b16 %v1759
    %v1782 = vunpack.c.l.b16 %v1760
    %v1783 = vunpack.c.l.b16 %v1761
    %v1784 = vunpack.c.l.b16 %v1762
    %v1785 = vunpack.c.l.b16 %v1763
    %v1786 = vunpack.c.l.b16 %v1764
    %v1787 = vpack.c.b16 %v1780, %v1779
    %v1788 = vpack.c.b16 %v1782, %v1781
    %v1789 = vpack.c.b16 %v1784, %v1783
    %v1790 = vpack.c.b16 %v1786, %v1785
    %v1796 = vsel %vm914, %v1765, 0
    %1798 = vmatprep.subr.bf16.mxu0 0
    %1799 = vmatpush1.bf16.msra.mxu0 %v1787
    %1800 = vmatprep.subr.bf16.mxu0 0
    %1801 = vmatpush1.bf16.msra.mxu0 %v1788
    %1802 = vmatprep.subr.bf16.mxu0 0
    %1803 = vmatpush1.bf16.msra.mxu0 %v1789
    %1804 = vmatprep.subr.bf16.mxu0 0
    %1805 = vmatpush1.bf16.msra.mxu0 %v1790
    %1806 = vmatprep.subr.bf16.mxu0 0
    %1807 = vmatpush1.bf16.msra.mxu0 0
    %1808 = vmatprep.subr.bf16.mxu0 0
    %1809 = vmatpush1.bf16.msra.mxu0 0
    %1810 = vmatprep.subr.bf16.mxu0 0
    %1811 = vmatpush1.bf16.msra.mxu0 0
    %1812 = vmatprep.subr.bf16.mxu0 0
    %1813 = vmatpush1.bf16.msra.mxu0 0
    %1814 = vmatprep.subr.bf16.mxu0 0
    %1815 = vmatpush1.bf16.msra.mxu0 0
    %1816 = vmatprep.subr.bf16.mxu0 0
    %1817 = vmatpush1.bf16.msra.mxu0 0
    %1818 = vmatprep.subr.bf16.mxu0 0
    %1819 = vmatpush1.bf16.msra.mxu0 0
    %1820 = vmatprep.subr.bf16.mxu0 0
    %1821 = vmatpush1.bf16.msra.mxu0 0
    %1822 = vmatprep.subr.bf16.mxu0 0
    %1823 = vmatpush1.bf16.msra.mxu0 0
    %1824 = vmatprep.subr.bf16.mxu0 0
    %1825 = vmatpush1.bf16.msra.mxu0 0
    %1826 = vmatprep.subr.bf16.mxu0 0
    %1827 = vmatpush1.bf16.msra.mxu0 0
    %1828 = vmatprep.subr.bf16.mxu0 0
    %1829 = vmatpush1.bf16.msra.mxu0 0
    %1830 = vmatprep.mubr.bf16.mxu0 0
    %1831 = vmatmul.mubr.bf16.gmra.mrb[0].mxu0 %v1796
    %v1832 = vpop.f32.mrb[0].mxu0
    %v1833 = vadd.f32 %v1770, %v1832
    %v1834 = vpop.f32.mrb[0].mxu0
    %v1835 = vpop.f32.mrb[0].mxu0
    %v1836 = vadd.f32 %v1770, %v1835
    %v1837 = vpop.f32.mrb[0].mxu0
    %1838 = vdwg.mxu0
    %v1839 = vadd.f32 %v1687, %v1833
    %v1840 = vadd.f32 %v1688, %v1836
    %v1841 = vld [vmem:[#allocation6 + $0x90] sm:$0x1]
    %v1842 = vld [vmem:[#allocation6 + $0x98] sm:$0x1]
    %v1843 = vsel %vm138, %v1839, 0.0
    %1844 = vadd.xlane.f32.xlu0 %v1843
    %v1845 = vpop.xlane.xlu0 %1844
    %v1846 = vsel %vm138, %v1840, 0.0
    %1847 = vadd.xlane.f32.xlu0 %v1846
    %v1848 = vpop.xlane.xlu0 %1847
    %v1849 = vmul.f32 %v1845, %v775
    %v1850 = vmul.f32 %v1848, %v775
    %v1851 = vsub.f32 %v1839, %v1849
    %v1852 = vsub.f32 %v1840, %v1850
    %v1853 = vmul.f32 %v1851, %v1851
    %v1854 = vmul.f32 %v1852, %v1852
    %v1855 = vsel %vm138, %v1853, 0.0
    %1856 = vadd.xlane.f32.xlu0 %v1855
    %v1857 = vpop.xlane.xlu0 %1856
    %v1858 = vsel %vm138, %v1854, 0.0
    %1859 = vadd.xlane.f32.xlu0 %v1858
    %v1860 = vpop.xlane.xlu0 %1859
    %v1861 = vmul.f32 %v1857, %v775
    %v1862 = vmul.f32 %v1860, %v775
    %v1863 = vadd.f32 %v1861, 1e-05
    %v1864 = vadd.f32 %v1862, 1e-05
    %v1865 = vrsqrt.pop %v1863
    %v1866 = vrsqrt.pop %v1864
    %v1867 = vmul.f32 %v1851, %v1865
    %v1868 = vmul.f32 %v1852, %v1866
    %v1869 = vlaneseq
    %v1870 = vshrl.u32 %v1869, 7
    %v1871 = vsub.s32 0, %v1870
    %v1872 = vrot.slane %v1841, %v1871
    %v1873 = vmul.f32 %v1867, %v1872
    %v1874 = vmul.f32 %v1868, %v1872
    %v1875 = vlaneseq
    %v1876 = vshrl.u32 %v1875, 7
    %v1877 = vsub.s32 0, %v1876
    %v1878 = vrot.slane %v1842, %v1877
    %v1879 = vadd.f32 %v1873, %v1878
    %v1880 = vadd.f32 %v1874, %v1878
    %v1881 = vld [vmem:[#allocation4 + $0xa8] sm:$0x1]
    %v1882 = vpack.c.bf16 %v1880, %v1879
    %v1884 = vsel %vm69, %v1881, 0
    %1886 = vmatprep.subr.bf16.mxu0 0
    %1887 = vmatpush1.bf16.msra.mxu0 %v1882
    %1888 = vmatprep.subr.bf16.mxu0 0
    %1889 = vmatpush1.bf16.msra.mxu0 0
    %1890 = vmatprep.subr.bf16.mxu0 0
    %1891 = vmatpush1.bf16.msra.mxu0 0
    %1892 = vmatprep.subr.bf16.mxu0 0
    %1893 = vmatpush1.bf16.msra.mxu0 0
    %1894 = vmatprep.subr.bf16.mxu0 0
    %1895 = vmatpush1.bf16.msra.mxu0 0
    %1896 = vmatprep.subr.bf16.mxu0 0
    %1897 = vmatpush1.bf16.msra.mxu0 0
    %1898 = vmatprep.subr.bf16.mxu0 0
    %1899 = vmatpush1.bf16.msra.mxu0 0
    %1900 = vmatprep.subr.bf16.mxu0 0
    %1901 = vmatpush1.bf16.msra.mxu0 0
    %1902 = vmatprep.subr.bf16.mxu0 0
    %1903 = vmatpush1.bf16.msra.mxu0 0
    %1904 = vmatprep.subr.bf16.mxu0 0
    %1905 = vmatpush1.bf16.msra.mxu0 0
    %1906 = vmatprep.subr.bf16.mxu0 0
    %1907 = vmatpush1.bf16.msra.mxu0 0
    %1908 = vmatprep.subr.bf16.mxu0 0
    %1909 = vmatpush1.bf16.msra.mxu0 0
    %1910 = vmatprep.subr.bf16.mxu0 0
    %1911 = vmatpush1.bf16.msra.mxu0 0
    %1912 = vmatprep.subr.bf16.mxu0 0
    %1913 = vmatpush1.bf16.msra.mxu0 0
    %1914 = vmatprep.subr.bf16.mxu0 0
    %1915 = vmatpush1.bf16.msra.mxu0 0
    %1916 = vmatprep.subr.bf16.mxu0 0
    %1917 = vmatpush1.bf16.msra.mxu0 0
    %1918 = vmatprep.mubr.bf16.mxu0 0
    %1919 = vmatmul.mubr.bf16.gmra.mrb[0].mxu0 %v1884
    %v1920 = vpop.f32.mrb[0].mxu0
    %v1921 = vadd.f32 0.0, %v1920
    %v1922 = vpop.f32.mrb[0].mxu0
    %v1923 = vpop.f32.mrb[0].mxu0
    %v1924 = vpop.f32.mrb[0].mxu0
    %1925 = vdwg.mxu0
    %v1926 = vld [vmem:[#allocation4 + $0xb0] sm:$0xf]
    %v1927 = vld [vmem:[#allocation4 + $0xb4] sm:$0xf]
    %v1928 = vld [vmem:[#allocation4 + $0xb8] sm:$0xf]
    %v1929 = vld [vmem:[#allocation4 + $0xbc] sm:$0xf]
    %v1930 = vpack.c.bf16 %v1921, %v1921
    %v1931 = vld [vmem:[#allocation6 + $0xa0] sm:$0x1]
    %v1932 = vlaneseq
    %v1933 = vshrl.u32 %v1932, 7
    %v1934 = vsub.s32 0, %v1933
    %v1935 = vrot.slane %v1931, %v1934
    %v1940 = vunpack.c.l.b16 %v1926
    %v1941 = vunpack.c.l.b16 %v1927
    %v1942 = vunpack.c.l.b16 %v1928
    %v1943 = vunpack.c.l.b16 %v1929
    %v1944 = vpack.c.b16 %v1941, %v1940
    %v1945 = vpack.c.b16 %v1943, %v1942
    %v1949 = vsel %vm138, %v1930, 0
    %1951 = vmatprep.subr.bf16.mxu0 0
    %1952 = vmatpush1.bf16.msra.mxu0 %v1944
    %1953 = vmatprep.subr.bf16.mxu0 0
    %1954 = vmatpush1.bf16.msra.mxu0 %v1945
    %1955 = vmatprep.subr.bf16.mxu0 0
    %1956 = vmatpush1.bf16.msra.mxu0 0
    %1957 = vmatprep.subr.bf16.mxu0 0
    %1958 = vmatpush1.bf16.msra.mxu0 0
    %1959 = vmatprep.subr.bf16.mxu0 0
    %1960 = vmatpush1.bf16.msra.mxu0 0
    %1961 = vmatprep.subr.bf16.mxu0 0
    %1962 = vmatpush1.bf16.msra.mxu0 0
    %1963 = vmatprep.subr.bf16.mxu0 0
    %1964 = vmatpush1.bf16.msra.mxu0 0
    %1965 = vmatprep.subr.bf16.mxu0 0
    %1966 = vmatpush1.bf16.msra.mxu0 0
    %1967 = vmatprep.subr.bf16.mxu0 0
    %1968 = vmatpush1.bf16.msra.mxu0 0
    %1969 = vmatprep.subr.bf16.mxu0 0
    %1970 = vmatpush1.bf16.msra.mxu0 0
    %1971 = vmatprep.subr.bf16.mxu0 0
    %1972 = vmatpush1.bf16.msra.mxu0 0
    %1973 = vmatprep.subr.bf16.mxu0 0
    %1974 = vmatpush1.bf16.msra.mxu0 0
    %1975 = vmatprep.subr.bf16.mxu0 0
    %1976 = vmatpush1.bf16.msra.mxu0 0
    %1977 = vmatprep.subr.bf16.mxu0 0
    %1978 = vmatpush1.bf16.msra.mxu0 0
    %1979 = vmatprep.subr.bf16.mxu0 0
    %1980 = vmatpush1.bf16.msra.mxu0 0
    %1981 = vmatprep.subr.bf16.mxu0 0
    %1982 = vmatpush1.bf16.msra.mxu0 0
    %1983 = vmatprep.mubr.bf16.mxu0 0
    %1984 = vmatmul.mubr.bf16.gmra.mrb[0].mxu0 %v1949
    %v1985 = vpop.f32.mrb[0].mxu0
    %v1986 = vadd.f32 %v1935, %v1985
    %v1987 = vpop.f32.mrb[0].mxu0
    %v1988 = vpop.f32.mrb[0].mxu0
    %v1989 = vpop.f32.mrb[0].mxu0
    %1990 = vdwg.mxu0
    %v1991 = vmax.f32 %v1986, 0.0
    %v1992 = vld [vmem:[#allocation4 + $0xc0] sm:$0xf]
    %v1993 = vld [vmem:[#allocation4 + $0xc4] sm:$0xf]
    %v1994 = vld [vmem:[#allocation4 + $0xc8] sm:$0xf]
    %v1995 = vld [vmem:[#allocation4 + $0xcc] sm:$0xf]
    %v1996 = vpack.c.bf16 %v1991, %v1991
    %v1997 = vld [vmem:[#allocation6 + $0xa8] sm:$0x1]
    %v1998 = vlaneseq
    %v1999 = vshrl.u32 %v1998, 7
    %v2000 = vsub.s32 0, %v1999
    %v2001 = vrot.slane %v1997, %v2000
    %v2006 = vunpack.c.l.b16 %v1992
    %v2007 = vunpack.c.l.b16 %v1993
    %v2008 = vunpack.c.l.b16 %v1994
    %v2009 = vunpack.c.l.b16 %v1995
    %v2010 = vpack.c.b16 %v2007, %v2006
    %v2011 = vpack.c.b16 %v2009, %v2008
    %v2015 = vsel %vm138, %v1996, 0
    %2017 = vmatprep.subr.bf16.mxu0 0
    %2018 = vmatpush1.bf16.msra.mxu0 %v2010
    %2019 = vmatprep.subr.bf16.mxu0 0
    %2020 = vmatpush1.bf16.msra.mxu0 %v2011
    %2021 = vmatprep.subr.bf16.mxu0 0
    %2022 = vmatpush1.bf16.msra.mxu0 0
    %2023 = vmatprep.subr.bf16.mxu0 0
    %2024 = vmatpush1.bf16.msra.mxu0 0
    %2025 = vmatprep.subr.bf16.mxu0 0
    %2026 = vmatpush1.bf16.msra.mxu0 0
    %2027 = vmatprep.subr.bf16.mxu0 0
    %2028 = vmatpush1.bf16.msra.mxu0 0
    %2029 = vmatprep.subr.bf16.mxu0 0
    %2030 = vmatpush1.bf16.msra.mxu0 0
    %2031 = vmatprep.subr.bf16.mxu0 0
    %2032 = vmatpush1.bf16.msra.mxu0 0
    %2033 = vmatprep.subr.bf16.mxu0 0
    %2034 = vmatpush1.bf16.msra.mxu0 0
    %2035 = vmatprep.subr.bf16.mxu0 0
    %2036 = vmatpush1.bf16.msra.mxu0 0
    %2037 = vmatprep.subr.bf16.mxu0 0
    %2038 = vmatpush1.bf16.msra.mxu0 0
    %2039 = vmatprep.subr.bf16.mxu0 0
    %2040 = vmatpush1.bf16.msra.mxu0 0
    %2041 = vmatprep.subr.bf16.mxu0 0
    %2042 = vmatpush1.bf16.msra.mxu0 0
    %2043 = vmatprep.subr.bf16.mxu0 0
    %2044 = vmatpush1.bf16.msra.mxu0 0
    %2045 = vmatprep.subr.bf16.mxu0 0
    %2046 = vmatpush1.bf16.msra.mxu0 0
    %2047 = vmatprep.subr.bf16.mxu0 0
    %2048 = vmatpush1.bf16.msra.mxu0 0
    %2049 = vmatprep.mubr.bf16.mxu0 0
    %2050 = vmatmul.mubr.bf16.gmra.mrb[0].mxu0 %v2015
    %v2051 = vpop.f32.mrb[0].mxu0
    %v2052 = vadd.f32 %v2001, %v2051
    %v2053 = vpop.f32.mrb[0].mxu0
    %v2054 = vpop.f32.mrb[0].mxu0
    %v2055 = vpop.f32.mrb[0].mxu0
    %2056 = vdwg.mxu0
    %vm2057 = vcmask 66560
    %2058 = vst.msk [vmem:[%s3] sm:$0x3] %vm2057, %v2052
    // Predicated region
    $region26: #{forward.1} parent=1 // pred_check
      _
    $region27: #{forward.1} parent=1 // pred_check_branch
      %2060 = sbr.rel (0) target = $region29
    $region28: #{forward.1} parent=1 // pred_region
      _
    $region29: #{forward.1} parent=1 // pred_fallthru
      _
    // Predicated region
    $region30: #{forward.1} parent=1 // pred_check
      _
    $region31: #{forward.1} parent=1 // pred_check_branch
      %2062 = sbr.rel (0) target = $region33
    $region32: #{forward.1} parent=1 // pred_region
      _
    $region33: #{forward.1} parent=1 // pred_fallthru
      _
    %2063 = vsyncpa [#allocation3], 1
    %2064 = vsyncpa [#allocation5], 1

</llo_original>
